<compile_context>
chip_gen: v6e
topology: v6e:2x2x1
jax: 0.10.0
libtpu: 0.0.40
codegen_flags: <defaults>
</compile_context>

<pallas_src>
import numpy as np
import jax
import jax.numpy as jnp
from jax import lax
from jax.experimental import pallas as pl
from jax.experimental.pallas import tpu as pltpu

EMB_DIM = 32                   # E ; hidden H = 2E = 64 ; 4E = 128
VOCAB = (20, 24, 16)           # (diag, proc, med) vocab sizes; V2 = med vocab

E = EMB_DIM
H = 2 * EMB_DIM
V2 = VOCAB[2]
GP = 128                       # per-gate lane padding (one full vreg of lanes)
LANES = 128

# ---- static row offsets inside the packed slabs ----
# wsmall (bf16, 416 x 128)
_WQ_R0 = 0          # rows [  0,128): query weights (q1<-h1 | q1<-h2 | q2<-h3) in lanes [0:96)
_WO1_R0 = 128       # rows [128,256): output-MLP layer-1 blocks k=0..3 (32 rows each), lanes [0:64)
_WO2_R0 = 256       # rows [256,320): output-MLP layer-2 weight, output lane-padded to 128
_GW1_R0 = 320       # rows [320,352): GCN layer-1 weights (ehr rows 0:16, ddi rows 16:32)
_GW2A_R0 = 352      # rows [352,384): GCN layer-2 weight, ehr graph
_GW2B_R0 = 384      # rows [384,416): GCN layer-2 weight, ddi graph
_WS_ROWS = 416
# aux (f32, 104 x 128)
_ADJ_R0 = 0         # rows [ 0,32): block-diag row-normalised adjacency (ehr | ddi)
_GB1_R0 = 32        # rows [32,64): GCN layer-1 bias, row-broadcast per graph
_GB2_R0 = 64        # rows [64,96): GCN layer-2 bias, row-broadcast per graph
_BQ1_R = 96
_BQ2_R = 97
_BO1_R = 98
_BO2_R = 99
_INTER_R = 100
_AUX_ROWS = 104


# ----------------------------------------------------------------------------
# The fused Pallas kernel
# ----------------------------------------------------------------------------
def _gamenet_kernel(act_ref, wgru_ref, wsmall_ref, aux_ref, out_ref):
    f32 = jnp.float32

    # ---- three single-step GRU encoders, fused into ONE gate matmul ----------------
    xbd = act_ref[:, 0:LANES]                         # (3,128) block-diag x + one-hot bias lanes
    ghh = act_ref[:, LANES:LANES + 3 * GP]            # (3,384) = h0@Whh + bhh, gate-padded
    h0p = act_ref[:, LANES + 3 * GP:LANES + 3 * GP + LANES]   # (3,128) previous hidden (zeros)

    gi = jnp.dot(xbd, wgru_ref[...].astype(f32),
                 preferred_element_type=f32)          # (3,384) = x@Wih + b_ih (bias via 1-hot lane)
    r = jax.nn.sigmoid(gi[:, 0:GP] + ghh[:, 0:GP])
    z = jax.nn.sigmoid(gi[:, GP:2 * GP] + ghh[:, GP:2 * GP])
    n = jnp.tanh(gi[:, 2 * GP:3 * GP] + r * ghh[:, 2 * GP:3 * GP])
    h_all = (1.0 - z) * n + z * h0p                   # (3,128); lanes [H:) are exactly 0

    # ---- query1 / query2: split-weight accumulation (relu distributes over concat) --
    relu_h = jnp.maximum(h_all, 0.0)
    qc = jnp.dot(relu_h, wsmall_ref[_WQ_R0:_WQ_R0 + LANES, :].astype(f32),
                 preferred_element_type=f32)          # (3,128)
    q1 = qc[0:1, 0:E] + qc[1:2, E:2 * E] + aux_ref[_BQ1_R:_BQ1_R + 1, 0:E]
    q2 = qc[2:3, 2 * E:3 * E] + aux_ref[_BQ2_R:_BQ2_R + 1, 0:E]
    Q = jnp.concatenate([q1, q2], axis=0)             # (2,E)

    # ---- the two 2-layer GCNs, merged via block-diagonal adjacency -------------------
    adj = aux_ref[_ADJ_R0:_ADJ_R0 + 2 * V2, 0:2 * V2]                         # (32,32)
    gw1 = wsmall_ref[_GW1_R0:_GW1_R0 + 2 * V2, 0:E].astype(f32)               # (32,E)
    hg = jnp.maximum(jnp.dot(adj, gw1, preferred_element_type=f32)
                     + aux_ref[_GB1_R0:_GB1_R0 + 2 * V2, 0:E], 0.0)           # dropout = id (eval)
    s_top = jnp.dot(hg[0:V2, :], wsmall_ref[_GW2A_R0:_GW2A_R0 + E, 0:E].astype(f32),
                    preferred_element_type=f32)
    s_bot = jnp.dot(hg[V2:2 * V2, :], wsmall_ref[_GW2B_R0:_GW2B_R0 + E, 0:E].astype(f32),
                    preferred_element_type=f32)
    s = jnp.concatenate([s_top, s_bot], axis=0)                               # (32,E)
    gout = (jnp.dot(adj, s, preferred_element_type=f32)
            + aux_ref[_GB2_R0:_GB2_R0 + 2 * V2, 0:E])                         # (32,E)
    inter = aux_ref[_INTER_R:_INTER_R + 1, 0:1]                               # (1,1)
    dm = gout[0:V2, :] + gout[V2:2 * V2, :] * inter                           # (V2,E) drug memory

    # ---- memory read with both queries stacked: kw = Q @ dm^T, F = kw @ dm -----------
    kw = lax.dot_general(Q, dm, (((1,), (1,)), ((), ())),
                         preferred_element_type=f32)                          # (2,V2)
    F = jnp.dot(kw, dm, preferred_element_type=f32)                           # (2,E)

    # ---- output MLP: 4 accumulating matmuls instead of one lane concat ---------------
    rqf = jnp.maximum(jnp.concatenate([Q, F], axis=0), 0.0)                   # rows: q1,q2,f1,f2
    hm = aux_ref[_BO1_R:_BO1_R + 1, 0:2 * E]                                  # (1,2E) = b_o1
    for k in range(4):
        wk = wsmall_ref[_WO1_R0 + k * E:_WO1_R0 + (k + 1) * E, 0:2 * E].astype(f32)
        hm = hm + jnp.dot(rqf[k:k + 1, :], wk, preferred_element_type=f32)
    logits = (jnp.dot(jnp.maximum(hm, 0.0),
                      wsmall_ref[_WO2_R0:_WO2_R0 + 2 * E, :].astype(f32),
                      preferred_element_type=f32)
              + aux_ref[_BO2_R:_BO2_R + 1, :])                                # (1,128) lane-padded

    # ---- single lane-dense output slab: row 0 = logits, rows 1..3 = hidden states ----
    out_ref[...] = jnp.concatenate([logits, h_all], axis=0)                   # (4,128)


# ----------------------------------------------------------------------------
# Parameter construction & host-side slab packing (deterministic, synthetic)
# ----------------------------------------------------------------------------
def _uniform(key, shape, scale=0.1):
    return jax.random.uniform(key, shape, jnp.float32, -scale, scale)


def _bf16_round(x):
    # Weights that live in the bf16 DMA slabs are rounded ONCE here so the
    # pure-JAX reference sees exactly the same values as the kernel.
    return x.astype(jnp.bfloat16).astype(jnp.float32)


def normalize_adj(mx):
    """Row-normalize (matches GCN.normalize): D^-1 (A + I)."""
    mx = mx + np.eye(mx.shape[0], dtype=np.float64)
    rowsum = mx.sum(1)
    r_inv = np.power(rowsum, -1.0)
    r_inv[np.isinf(r_inv)] = 0.0
    return (np.diagflat(r_inv) @ mx).astype(np.float32)


def _pack_params(p):
    # ---- slab 1: GRU input weights + input biases (bf16, 128 x 384) ----
    wgru = np.zeros((128, 3 * GP), np.float32)
    for i in range(3):
        wt = np.asarray(p["wih_t"][i])           # (E, 3H)
        bt = np.asarray(p["bih"][i])             # (3H,)
        for g in range(3):
            wgru[i * E:(i + 1) * E, g * GP:g * GP + H] = wt[:, g * H:(g + 1) * H]
            wgru[3 * E + i, g * GP:g * GP + H] = bt[g * H:(g + 1) * H]

    # ---- slab 2: every other matmul weight (bf16, 416 x 128) ----
    ws = np.zeros((_WS_ROWS, LANES), np.float32)
    wq1 = np.asarray(p["wq1_t"])                 # (4E, E)
    wq2 = np.asarray(p["wq2_t"])                 # (2E, E)
    ws[_WQ_R0:_WQ_R0 + H, 0:E] = wq1[0:H]
    ws[_WQ_R0:_WQ_R0 + H, E:2 * E] = wq1[H:2 * H]
    ws[_WQ_R0:_WQ_R0 + H, 2 * E:3 * E] = wq2
    wo1 = np.asarray(p["wo1_t"])                 # (4E, 2E)
    for k in range(4):
        ws[_WO1_R0 + k * E:_WO1_R0 + (k + 1) * E, 0:2 * E] = wo1[k * E:(k + 1) * E]
    ws[_WO2_R0:_WO2_R0 + 2 * E, 0:V2] = np.asarray(p["wo2_t"])
    gw1 = np.asarray(p["gw1"])
    gw2 = np.asarray(p["gw2"])
    ws[_GW1_R0:_GW1_R0 + V2, 0:E] = gw1[0]
    ws[_GW1_R0 + V2:_GW1_R0 + 2 * V2, 0:E] = gw1[1]
    ws[_GW2A_R0:_GW2A_R0 + E, 0:E] = gw2[0]
    ws[_GW2B_R0:_GW2B_R0 + E, 0:E] = gw2[1]

    # ---- slab 3: block-diag adjacency + all biases + inter (f32, 104 x 128) ----
    aux = np.zeros((_AUX_ROWS, LANES), np.float32)
    adjs = np.asarray(p["adjs"])
    aux[_ADJ_R0:_ADJ_R0 + V2, 0:V2] = adjs[0]
    aux[_ADJ_R0 + V2:_ADJ_R0 + 2 * V2, V2:2 * V2] = adjs[1]
    gb1 = np.asarray(p["gb1"])
    gb2 = np.asarray(p["gb2"])
    aux[_GB1_R0:_GB1_R0 + V2, 0:E] = np.tile(gb1[0][None], (V2, 1))
    aux[_GB1_R0 + V2:_GB1_R0 + 2 * V2, 0:E] = np.tile(gb1[1][None], (V2, 1))
    aux[_GB2_R0:_GB2_R0 + V2, 0:E] = np.tile(gb2[0][None], (V2, 1))
    aux[_GB2_R0 + V2:_GB2_R0 + 2 * V2, 0:E] = np.tile(gb2[1][None], (V2, 1))
    aux[_BQ1_R, 0:E] = np.asarray(p["bq1"]).reshape(-1)
    aux[_BQ2_R, 0:E] = np.asarray(p["bq2"]).reshape(-1)
    aux[_BO1_R, 0:2 * E] = np.asarray(p["bo1"]).reshape(-1)
    aux[_BO2_R, 0:V2] = np.asarray(p["bo2"]).reshape(-1)
    aux[_INTER_R, 0] = float(np.asarray(p["inter"]).reshape(-1)[0])

    # zero-hidden fast path: recurrent gate term reduces to per-gate-padded b_hh
    bhh = np.asarray(p["bhh"])                   # (3, 3H)
    ghh0 = np.zeros((3, 3 * GP), np.float32)
    for g in range(3):
        ghh0[:, g * GP:g * GP + H] = bhh[:, g * H:(g + 1) * H]

    return {"wgru": jnp.asarray(wgru).astype(jnp.bfloat16),
            "wsmall": jnp.asarray(ws).astype(jnp.bfloat16),
            "aux": jnp.asarray(aux),
            "ghh0": jnp.asarray(ghh0)}


def make_params(key, emb_dim=EMB_DIM, vocab=VOCAB):
    assert emb_dim == EMB_DIM and vocab == VOCAB
    keys = iter(jax.random.split(key, 64))
    p = {}

    # embeddings (last modality gets +1 row for the start token)
    emb_sizes = [vocab[0], vocab[1], vocab[2] + 1]
    p["emb"] = [_uniform(next(keys), (n, E)) for n in emb_sizes]

    # GRU encoders: PyTorch layout w_ih (3H, E), w_hh (3H, H); gate order r, z, n.
    wih_t, whh_t, bih, bhh = [], [], [], []
    for _ in range(3):
        wih_t.append(_bf16_round(_uniform(next(keys), (3 * H, E)).T))   # (E, 3H)
        whh_t.append(_uniform(next(keys), (3 * H, H)).T)                # (H, 3H), f32 (never DMA'd)
        bih.append(_bf16_round(_uniform(next(keys), (3 * H,))))
        bhh.append(_uniform(next(keys), (3 * H,)))
    p["wih_t"] = jnp.stack(wih_t)
    p["whh_t"] = jnp.stack(whh_t)
    p["bih"] = jnp.stack(bih)
    p["bhh"] = jnp.stack(bhh)

    # query / output linears (stored transposed: (in, out))
    p["wq1_t"] = _bf16_round(_uniform(next(keys), (E, 4 * E)).T)
    p["bq1"] = _uniform(next(keys), (1, E))
    p["wq2_t"] = _bf16_round(_uniform(next(keys), (E, 2 * E)).T)
    p["bq2"] = _uniform(next(keys), (1, E))
    p["wo1_t"] = _bf16_round(_uniform(next(keys), (2 * E, 4 * E)).T)
    p["bo1"] = _uniform(next(keys), (1, 2 * E))
    p["wo2_t"] = _bf16_round(_uniform(next(keys), (V2, 2 * E)).T)
    p["bo2"] = _uniform(next(keys), (1, V2))
    p["inter"] = _uniform(next(keys), (1, 1))

    # GCN params, index 0 = ehr, 1 = ddi (node features = eye(V) folded into gw1)
    p["gw1"] = _bf16_round(jnp.stack([_uniform(next(keys), (V2, E)) for _ in range(2)]))
    p["gb1"] = jnp.stack([_uniform(next(keys), (E,)) for _ in range(2)])
    p["gw2"] = _bf16_round(jnp.stack([_uniform(next(keys), (E, E)) for _ in range(2)]))
    p["gb2"] = jnp.stack([_uniform(next(keys), (E,)) for _ in range(2)])

    # synthetic symmetric 0/1 adjacency, row-normalized with self-loops
    rng = np.random.RandomState(0)
    adjs = []
    for _ in range(2):
        a = (rng.rand(V2, V2) > 0.6).astype(np.float64)
        a = np.maximum(a, a.T)
        np.fill_diagonal(a, 0.0)
        adjs.append(normalize_adj(a))
    p["adjs"] = jnp.asarray(np.stack(adjs))

    p.update(_pack_params(p))
    return p


# ----------------------------------------------------------------------------
# Forward pass (single fused Pallas call) and pure-JAX reference
# ----------------------------------------------------------------------------
def _seq_weights(L):
    # weight_i = exp(L - i), i = 0..L-1, then softmax over the sequence axis
    w = jnp.exp(jnp.arange(L, 0, -1, dtype=jnp.float32))
    return jax.nn.softmax(w).reshape(L, 1)


def _pooled_inputs(params, input_seqs, prev_input, vocab=VOCAB):
    """Embedding gather + sequence pooling stay in XLA (tiny L<=5 reductions)."""
    xs = []
    for i in range(2):
        idx = jnp.asarray(input_seqs[i], dtype=jnp.int32)
        emb = jnp.take(params["emb"][i], idx, axis=0)     # (L, E); dropout = identity (eval)
        xs.append(jnp.sum(emb * _seq_weights(len(input_seqs[i])), axis=0, keepdims=True))
    prev = prev_input if prev_input is not None else [vocab[2]]   # start token
    emb = jnp.take(params["emb"][2], jnp.asarray(prev, dtype=jnp.int32), axis=0)
    xs.append(jnp.sum(emb, axis=0, keepdims=True))
    return jnp.concatenate(xs, axis=0)                    # (3, E)


def _pad_gates(g):
    """(3, 3H) -> (3, 3*128): each gate dropped into the first H lanes of its 128-lane block."""
    out = []
    for k in range(3):
        out.append(jnp.concatenate(
            [g[:, k * H:(k + 1) * H], jnp.zeros((3, GP - H), jnp.float32)], axis=1))
    return jnp.concatenate(out, axis=1)


def gamenet_forward(params, input_seqs, prev_input, hidden=None):
    xs = _pooled_inputs(params, input_seqs, prev_input)   # (3, E)

    # block-diagonal inputs (3,3E) + one-hot lanes 96..98 which pick up b_ih inside the matmul
    eye3 = jnp.eye(3, dtype=jnp.float32)
    xbd = (xs[:, None, :] * eye3[:, :, None]).reshape(3, 3 * E)
    xbd = jnp.concatenate(
        [xbd, eye3, jnp.zeros((3, LANES - 3 * E - 3), jnp.float32)], axis=1)  # (3,128)

    if hidden is None or all(h is None for h in hidden):
        # default (hidden=[None]*3) fast path: no W_hh anywhere, gate term is padded b_hh
        ghh = params["ghh0"]
        h0p = jnp.zeros((3, LANES), jnp.float32)
    else:
        # non-zero initial hidden state kept behind this flag: the tiny h0 @ W_hh matmul is
        # done here in XLA so the kernel never DMAs W_hh on the default path.
        h0 = jnp.concatenate([jnp.asarray(h, jnp.float32).reshape(1, H) for h in hidden], axis=0)
        gh = params["bhh"] + jnp.einsum("gh,ghk->gk", h0, params["whh_t"])
        ghh = _pad_gates(gh)
        h0p = jnp.concatenate([h0, jnp.zeros((3, LANES - H), jnp.float32)], axis=1)

    act = jnp.concatenate([xbd, ghh, h0p], axis=1)        # (3, 640) single activation slab

    vmem = pl.BlockSpec(memory_space=pltpu.MemorySpace.VMEM)
    out = pl.pallas_call(
        _gamenet_kernel,
        out_shape=jax.ShapeDtypeStruct((4, LANES), jnp.float32),
        in_specs=[vmem, vmem, vmem, vmem],
        out_specs=vmem,
        compiler_params=pltpu.CompilerParams(vmem_limit_bytes=16 * 1024 * 1024),
    )(act, params["wgru"], params["wsmall"], params["aux"])

    logits = out[0:1, :V2]                                # (1, V2)
    hid = [out[1 + i, :H].reshape(1, 1, H) for i in range(3)]
    return logits, hid


def gamenet_forward_ref(params, input_seqs, prev_input, hidden=None):
    xs = _pooled_inputs(params, input_seqs, prev_input)
    if hidden is None:
        hidden = [None] * 3
    hs = []
    for i in range(3):
        x = xs[i:i + 1, :]
        h0 = (jnp.zeros((1, H), jnp.float32) if hidden[i] is None
              else jnp.asarray(hidden[i], jnp.float32).reshape(1, H))
        gi = x @ params["wih_t"][i] + params["bih"][i:i + 1, :]
        gh = h0 @ params["whh_t"][i] + params["bhh"][i:i + 1, :]
        r = jax.nn.sigmoid(gi[:, :H] + gh[:, :H])
        z = jax.nn.sigmoid(gi[:, H:2 * H] + gh[:, H:2 * H])
        n = jnp.tanh(gi[:, 2 * H:] + r * gh[:, 2 * H:])
        hs.append((1.0 - z) * n + z * h0)
    h1, h2, h3 = hs

    q1 = jnp.maximum(jnp.concatenate([h1, h2], axis=-1), 0.0) @ params["wq1_t"] + params["bq1"]
    q2 = jnp.maximum(h3, 0.0) @ params["wq2_t"] + params["bq2"]

    def gcn(g):
        adj = params["adjs"][g]
        hg = jnp.maximum(adj @ params["gw1"][g] + params["gb1"][g][None, :], 0.0)
        return adj @ (hg @ params["gw2"][g]) + params["gb2"][g][None, :]

    dm = gcn(0) + gcn(1) * params["inter"][0, 0]
    f1 = (q1 @ dm.T) @ dm
    f2 = (q2 @ dm.T) @ dm
    cat = jnp.concatenate([q1, q2, f1, f2], axis=-1)
    hm = jnp.maximum(cat, 0.0) @ params["wo1_t"] + params["bo1"]
    out = jnp.maximum(hm, 0.0) @ params["wo2_t"] + params["bo2"]
    return out, [h1.reshape(1, 1, H), h2.reshape(1, 1, H), h3.reshape(1, 1, H)]


# ----------------------------------------------------------------------------
if __name__ == "__main__":
    key = jax.random.PRNGKey(0)
    params = make_params(key)

    # one patient visit: diagnosis codes, procedure codes, previous medications
    input_seqs = [[3, 7, 1, 12, 5], [2, 9, 14, 4]]
    prev_input = [1, 6, 10]

    # default path: hidden = [None]*3 (zero initial GRU state)
    out, hidden = gamenet_forward(params, input_seqs, prev_input)
    jax.block_until_ready(out)
    ref_out, ref_hidden = gamenet_forward_ref(params, input_seqs, prev_input)
    np.testing.assert_allclose(np.asarray(out), np.asarray(ref_out), rtol=1e-2, atol=1e-3)
    for h, hr in zip(hidden, ref_hidden):
        np.testing.assert_allclose(np.asarray(h), np.asarray(hr), rtol=1e-2, atol=1e-3)

    # non-zero initial hidden state path (behind the `hidden=` flag; W_hh handled in XLA)
    hkeys = jax.random.split(jax.random.PRNGKey(1), 3)
    h_init = [0.1 * jax.random.normal(k, (1, 1, H), jnp.float32) for k in hkeys]
    out2, _ = gamenet_forward(params, input_seqs, prev_input, hidden=h_init)
    jax.block_until_ready(out2)
    ref_out2, _ = gamenet_forward_ref(params, input_seqs, prev_input, hidden=h_init)
    np.testing.assert_allclose(np.asarray(out2), np.asarray(ref_out2), rtol=1e-2, atol=1e-3)

    assert out.shape == (1, VOCAB[2])
    print("KERNEL_OK")
</pallas_src>

<mosaic_0001>
module attributes {stable_mosaic.version = 11 : i64} {
  func.func @_gamenet_kernel(%arg0: memref<3x640xf32, #tpu.memory_space<vmem>>, %arg1: memref<128x384xbf16, #tpu.memory_space<vmem>>, %arg2: memref<416x128xbf16, #tpu.memory_space<vmem>>, %arg3: memref<104x128xf32, #tpu.memory_space<vmem>>, %arg4: memref<4x128xf32, #tpu.memory_space<vmem>>) attributes {dimension_semantics = [], scalar_prefetch = 0 : i64, scratch_operands = 0 : i64, tpu.core_type = #tpu.core_type<tc>} {
    %c0 = arith.constant 0 : index
    %c0_0 = arith.constant 0 : index
    %0 = vector.load %arg0[%c0, %c0_0] : memref<3x640xf32, #tpu.memory_space<vmem>>, vector<3x128xf32>
    %c0_1 = arith.constant 0 : index
    %c128 = arith.constant 128 : index
    %1 = vector.load %arg0[%c0_1, %c128] : memref<3x640xf32, #tpu.memory_space<vmem>>, vector<3x384xf32>
    %c0_2 = arith.constant 0 : index
    %c512 = arith.constant 512 : index
    %2 = vector.load %arg0[%c0_2, %c512] : memref<3x640xf32, #tpu.memory_space<vmem>>, vector<3x128xf32>
    %c0_3 = arith.constant 0 : index
    %c0_4 = arith.constant 0 : index
    %3 = vector.load %arg1[%c0_3, %c0_4] : memref<128x384xbf16, #tpu.memory_space<vmem>>, vector<128x384xbf16>
    %4 = arith.extf %3 : vector<128x384xbf16> to vector<128x384xf32>
    %cst = arith.constant dense<0.000000e+00> : vector<3x384xf32>
    %5 = tpu.matmul %0, %4, %cst {dimension_numbers = #tpu.dot_dimension_numbers<[1], [0], [0], [1], [0, 0, 1, 1], [], []>} : vector<3x128xf32>, vector<128x384xf32>, vector<3x384xf32> -> vector<3x384xf32>
    %6 = vector.extract_strided_slice %5 {offsets = [0, 0], sizes = [3, 128], strides = [1, 1]} : vector<3x384xf32> to vector<3x128xf32>
    %7 = vector.extract_strided_slice %1 {offsets = [0, 0], sizes = [3, 128], strides = [1, 1]} : vector<3x384xf32> to vector<3x128xf32>
    %8 = arith.addf %6, %7 : vector<3x128xf32>
    %9 = arith.negf %8 : vector<3x128xf32>
    %10 = math.exp %9 : vector<3x128xf32>
    %cst_5 = arith.constant 1.000000e+00 : f32
    %11 = vector.broadcast %cst_5 : f32 to vector<3x128xf32>
    %12 = arith.addf %11, %10 : vector<3x128xf32>
    %13 = arith.divf %11, %12 : vector<3x128xf32>
    %14 = vector.extract_strided_slice %5 {offsets = [0, 128], sizes = [3, 128], strides = [1, 1]} : vector<3x384xf32> to vector<3x128xf32>
    %15 = vector.extract_strided_slice %1 {offsets = [0, 128], sizes = [3, 128], strides = [1, 1]} : vector<3x384xf32> to vector<3x128xf32>
    %16 = arith.addf %14, %15 : vector<3x128xf32>
    %17 = arith.negf %16 : vector<3x128xf32>
    %18 = math.exp %17 : vector<3x128xf32>
    %cst_6 = arith.constant 1.000000e+00 : f32
    %19 = vector.broadcast %cst_6 : f32 to vector<3x128xf32>
    %20 = arith.addf %19, %18 : vector<3x128xf32>
    %21 = arith.divf %19, %20 : vector<3x128xf32>
    %22 = vector.extract_strided_slice %5 {offsets = [0, 256], sizes = [3, 128], strides = [1, 1]} : vector<3x384xf32> to vector<3x128xf32>
    %23 = vector.extract_strided_slice %1 {offsets = [0, 256], sizes = [3, 128], strides = [1, 1]} : vector<3x384xf32> to vector<3x128xf32>
    %24 = arith.mulf %13, %23 : vector<3x128xf32>
    %25 = arith.addf %22, %24 : vector<3x128xf32>
    %26 = math.tanh %25 : vector<3x128xf32>
    %cst_7 = arith.constant 1.000000e+00 : f32
    %27 = vector.broadcast %cst_7 : f32 to vector<3x128xf32>
    %28 = arith.subf %27, %21 : vector<3x128xf32>
    %29 = arith.mulf %28, %26 : vector<3x128xf32>
    %30 = arith.mulf %21, %2 : vector<3x128xf32>
    %31 = arith.addf %29, %30 : vector<3x128xf32>
    %cst_8 = arith.constant 0.000000e+00 : f32
    %32 = vector.broadcast %cst_8 : f32 to vector<3x128xf32>
    %33 = arith.maximumf %31, %32 : vector<3x128xf32>
    %c0_9 = arith.constant 0 : index
    %c0_10 = arith.constant 0 : index
    %34 = vector.load %arg2[%c0_9, %c0_10] : memref<416x128xbf16, #tpu.memory_space<vmem>>, vector<128x128xbf16>
    %35 = arith.extf %34 : vector<128x128xbf16> to vector<128x128xf32>
    %cst_11 = arith.constant dense<0.000000e+00> : vector<3x128xf32>
    %36 = tpu.matmul %33, %35, %cst_11 {dimension_numbers = #tpu.dot_dimension_numbers<[1], [0], [0], [1], [0, 0, 1, 1], [], []>} : vector<3x128xf32>, vector<128x128xf32>, vector<3x128xf32> -> vector<3x128xf32>
    %37 = vector.extract_strided_slice %36 {offsets = [0, 0], sizes = [1, 32], strides = [1, 1]} : vector<3x128xf32> to vector<1x32xf32>
    %38 = vector.extract_strided_slice %36 {offsets = [1, 32], sizes = [1, 32], strides = [1, 1]} : vector<3x128xf32> to vector<1x32xf32>
    %39 = arith.addf %37, %38 : vector<1x32xf32>
    %c96 = arith.constant 96 : index
    %c0_12 = arith.constant 0 : index
    %40 = vector.load %arg3[%c96, %c0_12] : memref<104x128xf32, #tpu.memory_space<vmem>>, vector<1x32xf32>
    %41 = arith.addf %39, %40 : vector<1x32xf32>
    %42 = vector.extract_strided_slice %36 {offsets = [2, 64], sizes = [1, 32], strides = [1, 1]} : vector<3x128xf32> to vector<1x32xf32>
    %c97 = arith.constant 97 : index
    %c0_13 = arith.constant 0 : index
    %43 = vector.load %arg3[%c97, %c0_13] : memref<104x128xf32, #tpu.memory_space<vmem>>, vector<1x32xf32>
    %44 = arith.addf %42, %43 : vector<1x32xf32>
    %45 = tpu.concatenate %41, %44 in 0 : vector<1x32xf32>, vector<1x32xf32> -> vector<2x32xf32>
    %c0_14 = arith.constant 0 : index
    %c0_15 = arith.constant 0 : index
    %46 = vector.load %arg3[%c0_14, %c0_15] : memref<104x128xf32, #tpu.memory_space<vmem>>, vector<32x32xf32>
    %c320 = arith.constant 320 : index
    %c0_16 = arith.constant 0 : index
    %47 = vector.load %arg2[%c320, %c0_16] : memref<416x128xbf16, #tpu.memory_space<vmem>>, vector<32x32xbf16>
    %48 = arith.extf %47 : vector<32x32xbf16> to vector<32x32xf32>
    %cst_17 = arith.constant dense<0.000000e+00> : vector<32x32xf32>
    %49 = tpu.matmul %46, %48, %cst_17 {dimension_numbers = #tpu.dot_dimension_numbers<[1], [0], [0], [1], [0, 0, 1, 1], [], []>} : vector<32x32xf32>, vector<32x32xf32>, vector<32x32xf32> -> vector<32x32xf32>
    %c32 = arith.constant 32 : index
    %c0_18 = arith.constant 0 : index
    %50 = vector.load %arg3[%c32, %c0_18] : memref<104x128xf32, #tpu.memory_space<vmem>>, vector<32x32xf32>
    %51 = arith.addf %49, %50 : vector<32x32xf32>
    %cst_19 = arith.constant 0.000000e+00 : f32
    %52 = vector.broadcast %cst_19 : f32 to vector<32x32xf32>
    %53 = arith.maximumf %51, %52 : vector<32x32xf32>
    %54 = vector.extract_strided_slice %53 {offsets = [0, 0], sizes = [16, 32], strides = [1, 1]} : vector<32x32xf32> to vector<16x32xf32>
    %c352 = arith.constant 352 : index
    %c0_20 = arith.constant 0 : index
    %55 = vector.load %arg2[%c352, %c0_20] : memref<416x128xbf16, #tpu.memory_space<vmem>>, vector<32x32xbf16>
    %56 = arith.extf %55 : vector<32x32xbf16> to vector<32x32xf32>
    %cst_21 = arith.constant dense<0.000000e+00> : vector<16x32xf32>
    %57 = tpu.matmul %54, %56, %cst_21 {dimension_numbers = #tpu.dot_dimension_numbers<[1], [0], [0], [1], [0, 0, 1, 1], [], []>} : vector<16x32xf32>, vector<32x32xf32>, vector<16x32xf32> -> vector<16x32xf32>
    %58 = vector.extract_strided_slice %53 {offsets = [16, 0], sizes = [16, 32], strides = [1, 1]} : vector<32x32xf32> to vector<16x32xf32>
    %c384 = arith.constant 384 : index
    %c0_22 = arith.constant 0 : index
    %59 = vector.load %arg2[%c384, %c0_22] : memref<416x128xbf16, #tpu.memory_space<vmem>>, vector<32x32xbf16>
    %60 = arith.extf %59 : vector<32x32xbf16> to vector<32x32xf32>
    %cst_23 = arith.constant dense<0.000000e+00> : vector<16x32xf32>
    %61 = tpu.matmul %58, %60, %cst_23 {dimension_numbers = #tpu.dot_dimension_numbers<[1], [0], [0], [1], [0, 0, 1, 1], [], []>} : vector<16x32xf32>, vector<32x32xf32>, vector<16x32xf32> -> vector<16x32xf32>
    %62 = tpu.concatenate %57, %61 in 0 : vector<16x32xf32>, vector<16x32xf32> -> vector<32x32xf32>
    %cst_24 = arith.constant dense<0.000000e+00> : vector<32x32xf32>
    %63 = tpu.matmul %46, %62, %cst_24 {dimension_numbers = #tpu.dot_dimension_numbers<[1], [0], [0], [1], [0, 0, 1, 1], [], []>} : vector<32x32xf32>, vector<32x32xf32>, vector<32x32xf32> -> vector<32x32xf32>
    %c64 = arith.constant 64 : index
    %c0_25 = arith.constant 0 : index
    %64 = vector.load %arg3[%c64, %c0_25] : memref<104x128xf32, #tpu.memory_space<vmem>>, vector<32x32xf32>
    %65 = arith.addf %63, %64 : vector<32x32xf32>
    %c100 = arith.constant 100 : index
    %c0_26 = arith.constant 0 : index
    %66 = vector.load %arg3[%c100, %c0_26] : memref<104x128xf32, #tpu.memory_space<vmem>>, vector<1x1xf32>
    %67 = vector.extract_strided_slice %65 {offsets = [0, 0], sizes = [16, 32], strides = [1, 1]} : vector<32x32xf32> to vector<16x32xf32>
    %68 = vector.extract_strided_slice %65 {offsets = [16, 0], sizes = [16, 32], strides = [1, 1]} : vector<32x32xf32> to vector<16x32xf32>
    %69 = vector.broadcast %66 : vector<1x1xf32> to vector<16x32xf32>
    %70 = arith.mulf %68, %69 : vector<16x32xf32>
    %71 = arith.addf %67, %70 : vector<16x32xf32>
    %cst_27 = arith.constant dense<0.000000e+00> : vector<2x16xf32>
    %72 = tpu.matmul %45, %71, %cst_27 {dimension_numbers = #tpu.dot_dimension_numbers<[1], [1], [0], [0], [0, 0, 1, 0], [], []>} : vector<2x32xf32>, vector<16x32xf32>, vector<2x16xf32> -> vector<2x16xf32>
    %cst_28 = arith.constant dense<0.000000e+00> : vector<2x32xf32>
    %73 = tpu.matmul %72, %71, %cst_28 {dimension_numbers = #tpu.dot_dimension_numbers<[1], [0], [0], [1], [0, 0, 1, 1], [], []>} : vector<2x16xf32>, vector<16x32xf32>, vector<2x32xf32> -> vector<2x32xf32>
    %74 = tpu.concatenate %45, %73 in 0 : vector<2x32xf32>, vector<2x32xf32> -> vector<4x32xf32>
    %cst_29 = arith.constant 0.000000e+00 : f32
    %75 = vector.broadcast %cst_29 : f32 to vector<4x32xf32>
    %76 = arith.maximumf %74, %75 : vector<4x32xf32>
    %c98 = arith.constant 98 : index
    %c0_30 = arith.constant 0 : index
    %77 = vector.load %arg3[%c98, %c0_30] : memref<104x128xf32, #tpu.memory_space<vmem>>, vector<1x64xf32>
    %c128_31 = arith.constant 128 : index
    %c0_32 = arith.constant 0 : index
    %78 = vector.load %arg2[%c128_31, %c0_32] : memref<416x128xbf16, #tpu.memory_space<vmem>>, vector<32x64xbf16>
    %79 = arith.extf %78 : vector<32x64xbf16> to vector<32x64xf32>
    %80 = vector.extract_strided_slice %76 {offsets = [0, 0], sizes = [1, 32], strides = [1, 1]} : vector<4x32xf32> to vector<1x32xf32>
    %cst_33 = arith.constant dense<0.000000e+00> : vector<1x64xf32>
    %81 = tpu.matmul %80, %79, %cst_33 {dimension_numbers = #tpu.dot_dimension_numbers<[1], [0], [0], [1], [0, 0, 1, 1], [], []>} : vector<1x32xf32>, vector<32x64xf32>, vector<1x64xf32> -> vector<1x64xf32>
    %82 = arith.addf %77, %81 : vector<1x64xf32>
    %c160 = arith.constant 160 : index
    %c0_34 = arith.constant 0 : index
    %83 = vector.load %arg2[%c160, %c0_34] : memref<416x128xbf16, #tpu.memory_space<vmem>>, vector<32x64xbf16>
    %84 = arith.extf %83 : vector<32x64xbf16> to vector<32x64xf32>
    %85 = vector.extract_strided_slice %76 {offsets = [1, 0], sizes = [1, 32], strides = [1, 1]} : vector<4x32xf32> to vector<1x32xf32>
    %cst_35 = arith.constant dense<0.000000e+00> : vector<1x64xf32>
    %86 = tpu.matmul %85, %84, %cst_35 {dimension_numbers = #tpu.dot_dimension_numbers<[1], [0], [0], [1], [0, 0, 1, 1], [], []>} : vector<1x32xf32>, vector<32x64xf32>, vector<1x64xf32> -> vector<1x64xf32>
    %87 = arith.addf %82, %86 : vector<1x64xf32>
    %c192 = arith.constant 192 : index
    %c0_36 = arith.constant 0 : index
    %88 = vector.load %arg2[%c192, %c0_36] : memref<416x128xbf16, #tpu.memory_space<vmem>>, vector<32x64xbf16>
    %89 = arith.extf %88 : vector<32x64xbf16> to vector<32x64xf32>
    %90 = vector.extract_strided_slice %76 {offsets = [2, 0], sizes = [1, 32], strides = [1, 1]} : vector<4x32xf32> to vector<1x32xf32>
    %cst_37 = arith.constant dense<0.000000e+00> : vector<1x64xf32>
    %91 = tpu.matmul %90, %89, %cst_37 {dimension_numbers = #tpu.dot_dimension_numbers<[1], [0], [0], [1], [0, 0, 1, 1], [], []>} : vector<1x32xf32>, vector<32x64xf32>, vector<1x64xf32> -> vector<1x64xf32>
    %92 = arith.addf %87, %91 : vector<1x64xf32>
    %c224 = arith.constant 224 : index
    %c0_38 = arith.constant 0 : index
    %93 = vector.load %arg2[%c224, %c0_38] : memref<416x128xbf16, #tpu.memory_space<vmem>>, vector<32x64xbf16>
    %94 = arith.extf %93 : vector<32x64xbf16> to vector<32x64xf32>
    %95 = vector.extract_strided_slice %76 {offsets = [3, 0], sizes = [1, 32], strides = [1, 1]} : vector<4x32xf32> to vector<1x32xf32>
    %cst_39 = arith.constant dense<0.000000e+00> : vector<1x64xf32>
    %96 = tpu.matmul %95, %94, %cst_39 {dimension_numbers = #tpu.dot_dimension_numbers<[1], [0], [0], [1], [0, 0, 1, 1], [], []>} : vector<1x32xf32>, vector<32x64xf32>, vector<1x64xf32> -> vector<1x64xf32>
    %97 = arith.addf %92, %96 : vector<1x64xf32>
    %cst_40 = arith.constant 0.000000e+00 : f32
    %98 = vector.broadcast %cst_40 : f32 to vector<1x64xf32>
    %99 = arith.maximumf %97, %98 : vector<1x64xf32>
    %c256 = arith.constant 256 : index
    %c0_41 = arith.constant 0 : index
    %100 = vector.load %arg2[%c256, %c0_41] : memref<416x128xbf16, #tpu.memory_space<vmem>>, vector<64x128xbf16>
    %101 = arith.extf %100 : vector<64x128xbf16> to vector<64x128xf32>
    %cst_42 = arith.constant dense<0.000000e+00> : vector<1x128xf32>
    %102 = tpu.matmul %99, %101, %cst_42 {dimension_numbers = #tpu.dot_dimension_numbers<[1], [0], [0], [1], [0, 0, 1, 1], [], []>} : vector<1x64xf32>, vector<64x128xf32>, vector<1x128xf32> -> vector<1x128xf32>
    %c99 = arith.constant 99 : index
    %c0_43 = arith.constant 0 : index
    %103 = vector.load %arg3[%c99, %c0_43] : memref<104x128xf32, #tpu.memory_space<vmem>>, vector<1x128xf32>
    %104 = arith.addf %102, %103 : vector<1x128xf32>
    %105 = tpu.concatenate %104, %31 in 0 : vector<1x128xf32>, vector<3x128xf32> -> vector<4x128xf32>
    %c0_44 = arith.constant 0 : index
    %c0_45 = arith.constant 0 : index
    %106 = vector.load %arg4[%c0_44, %c0_45] : memref<4x128xf32, #tpu.memory_space<vmem>>, vector<4x128xf32>
    tpu.vector_store %arg4[%c0_44, %c0_45], %105 {strides = array<i32>} : memref<4x128xf32, #tpu.memory_space<vmem>>, vector<4x128xf32>,
    return
  }
}

</mosaic_0001>

<llo_original>
// kernel: tpu_custom_call.1
$region0: #{tpu_custom_call.1}
  #allocation0 [shape = 'u32[]', space=smem, size = 0x4, offset = 0x4, fixed_abs, tag = 'smem constant byte address 0x4 - core index']
  #allocation1 [shape = 'u32[144,128]{1,0:T(1,128)}', space=vmem, size = 0x12000, scoped, tag = 'internal scratch']
  %s0 = inlined_call_operand.hbm [shape: f32[3,640], index: 0, kind: input, shape index: {}]
  %s1 = inlined_call_operand.hbm [shape: bf16[128,384], index: 1, kind: input, shape index: {}]
  %s2 = inlined_call_operand.hbm [shape: bf16[416,128], index: 2, kind: input, shape index: {}]
  %s3 = inlined_call_operand.hbm [shape: f32[104,128], index: 3, kind: input, shape index: {}]
  %s4 = inlined_call_operand.hbm [shape: f32[4,128], index: 4, kind: output, shape index: {}]
  %s5 = sld [smem:[#allocation0]]
  $region42: #{tpu_custom_call.1} parent=0
    _
  %s7 = ssub.s32 1, %s5
  %s8 = scalar_select 0, %s7, %s5
  $region1: #{tpu_custom_call.1} parent=0
    #allocation2 [shape = 'u8[10240]{0}', space=vmem, size = 0x2800, scoped, tag = 'input window, operand 0, single buffered']
    #allocation3 [shape = 's32[1]{0}', space=sflag, size = 0x4, scoped, tag = 'scoped memory for tpu_custom_call.1']
    #allocation4 [shape = 's32[1]{0}', space=sflag, size = 0x4, scoped, tag = 'scoped memory for tpu_custom_call.1']
    #allocation5 [shape = 'u8[98304]{0}', space=vmem, size = 0x18000, scoped, tag = 'input window, operand 1, single buffered']
    #allocation6 [shape = 's32[1]{0}', space=sflag, size = 0x4, scoped, tag = 'scoped memory for tpu_custom_call.1']
    #allocation7 [shape = 'u8[106496]{0}', space=vmem, size = 0x1a000, scoped, tag = 'input window, operand 2, single buffered']
    #allocation8 [shape = 'u8[53248]{0}', space=vmem, size = 0xd000, scoped, tag = 'input window, operand 3, single buffered']
    #allocation9 [shape = 's32[1]{0}', space=sflag, size = 0x4, scoped, tag = 'scoped memory for tpu_custom_call.1']
    #allocation10 [shape = 'u8[2048]{0}', space=vmem, size = 0x800, scoped, tag = 'output window, operand 0, single buffered']
    %9 = vsyncpa [#allocation3], 0
    %10 = vsyncpa [#allocation6], 0
    %11 = vsyncpa [#allocation9], 0
    %12 = vsyncpa [#allocation4], 0
    // Predicated region
    $region2: #{tpu_custom_call.1} parent=1 // pred_check
      _
    $region3: #{tpu_custom_call.1} parent=1 // pred_check_branch
      %14 = sbr.rel (0) target = $region5
    $region4: #{tpu_custom_call.1} parent=1 // pred_region
      %s16 = ssub.s32 320, 320
      %17 = vsyncadd [#allocation3], %s16
      %s19 = sshll.u32 [#allocation2], 4
      %s20 = int_to_ptr.vmem [resolvable:$true] %s19
      %22 = dma.hbm_to_vmem [thread:$0]  %s0, 320, %s20, [#allocation3]
    $region5: #{tpu_custom_call.1} parent=1 // pred_fallthru
      _
    // Predicated region
    $region6: #{tpu_custom_call.1} parent=1 // pred_check
      _
    $region7: #{tpu_custom_call.1} parent=1 // pred_check_branch
      %24 = sbr.rel (0) target = $region9
    $region8: #{tpu_custom_call.1} parent=1 // pred_region
      %s26 = ssub.s32 3072, 3072
      %27 = vsyncadd [#allocation6], %s26
      %s28 = sshll.u32 [#allocation5], 4
      %s29 = int_to_ptr.vmem [resolvable:$true] %s28
      %34 = dma.hbm_to_vmem [thread:$0]  %s1, 3072, %s29, [#allocation6], 192, 192, 12
    $region9: #{tpu_custom_call.1} parent=1 // pred_fallthru
      _
    // Predicated region
    $region10: #{tpu_custom_call.1} parent=1 // pred_check
      _
    $region11: #{tpu_custom_call.1} parent=1 // pred_check_branch
      %36 = sbr.rel (0) target = $region13
    $region12: #{tpu_custom_call.1} parent=1 // pred_region
      %s38 = ssub.s32 3328, 3328
      %39 = vsyncadd [#allocation6], %s38
      %s40 = sshll.u32 [#allocation7], 4
      %s41 = int_to_ptr.vmem [resolvable:$true] %s40
      %46 = dma.hbm_to_vmem [thread:$0]  %s2, 3328, %s41, [#allocation6], 64, 64, 4
    $region13: #{tpu_custom_call.1} parent=1 // pred_fallthru
      _
    // Predicated region
    $region14: #{tpu_custom_call.1} parent=1 // pred_check
      _
    $region15: #{tpu_custom_call.1} parent=1 // pred_check_branch
      %48 = sbr.rel (0) target = $region17
    $region16: #{tpu_custom_call.1} parent=1 // pred_region
      %s50 = ssub.s32 1664, 1664
      %51 = vsyncadd [#allocation9], %s50
      %s52 = sshll.u32 [#allocation8], 4
      %s53 = int_to_ptr.vmem [resolvable:$true] %s52
      %58 = dma.hbm_to_vmem [thread:$0]  %s3, 1664, %s53, [#allocation9], 128, 128, 8
    $region17: #{tpu_custom_call.1} parent=1 // pred_fallthru
      _
    // Predicated region
    $region18: #{tpu_custom_call.1} parent=1 // pred_check
      _
    $region19: #{tpu_custom_call.1} parent=1 // pred_check_branch
      %60 = sbr.rel (0) target = $region21
    $region20: #{tpu_custom_call.1} parent=1 // pred_region
      %61 = dma.done [#allocation3], 320
    $region21: #{tpu_custom_call.1} parent=1 // pred_fallthru
      _
    // Predicated region
    $region22: #{tpu_custom_call.1} parent=1 // pred_check
      _
    $region23: #{tpu_custom_call.1} parent=1 // pred_check_branch
      %63 = sbr.rel (0) target = $region25
    $region24: #{tpu_custom_call.1} parent=1 // pred_region
      %64 = dma.done [#allocation6], 3072
    $region25: #{tpu_custom_call.1} parent=1 // pred_fallthru
      _
    // Predicated region
    $region26: #{tpu_custom_call.1} parent=1 // pred_check
      _
    $region27: #{tpu_custom_call.1} parent=1 // pred_check_branch
      %66 = sbr.rel (0) target = $region29
    $region28: #{tpu_custom_call.1} parent=1 // pred_region
      %67 = dma.done [#allocation6], 3328
    $region29: #{tpu_custom_call.1} parent=1 // pred_fallthru
      _
    // Predicated region
    $region30: #{tpu_custom_call.1} parent=1 // pred_check
      _
    $region31: #{tpu_custom_call.1} parent=1 // pred_check_branch
      %69 = sbr.rel (0) target = $region33
    $region32: #{tpu_custom_call.1} parent=1 // pred_region
      %70 = dma.done [#allocation9], 1664
    $region33: #{tpu_custom_call.1} parent=1 // pred_fallthru
      _
    %v71 = vld [vmem:[#allocation2] sm:$0x7]
    %v72 = vld [vmem:[#allocation2 + $0x4] sm:$0x77]
    %v73 = vld [vmem:[#allocation2 + $0xc] sm:$0x7]
    %v74 = vld [vmem:[#allocation2 + $0x10] sm:$0x7]
    %v75 = vld [vmem:[#allocation5] sm:$0xff]
    %v76 = vld [vmem:[#allocation5 + $0x8] sm:$0xf]
    %v77 = vld [vmem:[#allocation5 + $0xc] sm:$0xff]
    %v78 = vld [vmem:[#allocation5 + $0x14] sm:$0xf]
    %v79 = vld [vmem:[#allocation5 + $0x18] sm:$0xff]
    %v80 = vld [vmem:[#allocation5 + $0x20] sm:$0xf]
    %v81 = vld [vmem:[#allocation5 + $0x24] sm:$0xff]
    %v82 = vld [vmem:[#allocation5 + $0x2c] sm:$0xf]
    %v83 = vld [vmem:[#allocation5 + $0x30] sm:$0xff]
    %v84 = vld [vmem:[#allocation5 + $0x38] sm:$0xf]
    %v85 = vld [vmem:[#allocation5 + $0x3c] sm:$0xff]
    %v86 = vld [vmem:[#allocation5 + $0x44] sm:$0xf]
    %v87 = vld [vmem:[#allocation5 + $0x48] sm:$0xff]
    %v88 = vld [vmem:[#allocation5 + $0x50] sm:$0xf]
    %v89 = vld [vmem:[#allocation5 + $0x54] sm:$0xff]
    %v90 = vld [vmem:[#allocation5 + $0x5c] sm:$0xf]
    %v91 = vld [vmem:[#allocation5 + $0x60] sm:$0xff]
    %v92 = vld [vmem:[#allocation5 + $0x68] sm:$0xf]
    %v93 = vld [vmem:[#allocation5 + $0x6c] sm:$0xff]
    %v94 = vld [vmem:[#allocation5 + $0x74] sm:$0xf]
    %v95 = vld [vmem:[#allocation5 + $0x78] sm:$0xff]
    %v96 = vld [vmem:[#allocation5 + $0x80] sm:$0xf]
    %v97 = vld [vmem:[#allocation5 + $0x84] sm:$0xff]
    %v98 = vld [vmem:[#allocation5 + $0x8c] sm:$0xf]
    %v99 = vld [vmem:[#allocation5 + $0x90] sm:$0xff]
    %v100 = vld [vmem:[#allocation5 + $0x98] sm:$0xf]
    %v101 = vld [vmem:[#allocation5 + $0x9c] sm:$0xff]
    %v102 = vld [vmem:[#allocation5 + $0xa4] sm:$0xf]
    %v103 = vld [vmem:[#allocation5 + $0xa8] sm:$0xff]
    %v104 = vld [vmem:[#allocation5 + $0xb0] sm:$0xf]
    %v105 = vld [vmem:[#allocation5 + $0xb4] sm:$0xff]
    %v106 = vld [vmem:[#allocation5 + $0xbc] sm:$0xf]
    %v107 = vunpack.c.l.bf16 %v75
    %v108 = vunpack.c.h.bf16 %v75
    %v109 = vunpack.c.l.bf16 %v76
    %v110 = vunpack.c.l.bf16 %v77
    %v111 = vunpack.c.h.bf16 %v77
    %v112 = vunpack.c.l.bf16 %v78
    %v113 = vunpack.c.l.bf16 %v79
    %v114 = vunpack.c.h.bf16 %v79
    %v115 = vunpack.c.l.bf16 %v80
    %v116 = vunpack.c.l.bf16 %v81
    %v117 = vunpack.c.h.bf16 %v81
    %v118 = vunpack.c.l.bf16 %v82
    %v119 = vunpack.c.l.bf16 %v83
    %v120 = vunpack.c.h.bf16 %v83
    %v121 = vunpack.c.l.bf16 %v84
    %v122 = vunpack.c.l.bf16 %v85
    %v123 = vunpack.c.h.bf16 %v85
    %v124 = vunpack.c.l.bf16 %v86
    %v125 = vunpack.c.l.bf16 %v87
    %v126 = vunpack.c.h.bf16 %v87
    %v127 = vunpack.c.l.bf16 %v88
    %v128 = vunpack.c.l.bf16 %v89
    %v129 = vunpack.c.h.bf16 %v89
    %v130 = vunpack.c.l.bf16 %v90
    %v131 = vunpack.c.l.bf16 %v91
    %v132 = vunpack.c.h.bf16 %v91
    %v133 = vunpack.c.l.bf16 %v92
    %v134 = vunpack.c.l.bf16 %v93
    %v135 = vunpack.c.h.bf16 %v93
    %v136 = vunpack.c.l.bf16 %v94
    %v137 = vunpack.c.l.bf16 %v95
    %v138 = vunpack.c.h.bf16 %v95
    %v139 = vunpack.c.l.bf16 %v96
    %v140 = vunpack.c.l.bf16 %v97
    %v141 = vunpack.c.h.bf16 %v97
    %v142 = vunpack.c.l.bf16 %v98
    %v143 = vunpack.c.l.bf16 %v99
    %v144 = vunpack.c.h.bf16 %v99
    %v145 = vunpack.c.l.bf16 %v100
    %v146 = vunpack.c.l.bf16 %v101
    %v147 = vunpack.c.h.bf16 %v101
    %v148 = vunpack.c.l.bf16 %v102
    %v149 = vunpack.c.l.bf16 %v103
    %v150 = vunpack.c.h.bf16 %v103
    %v151 = vunpack.c.l.bf16 %v104
    %v152 = vunpack.c.l.bf16 %v105
    %v153 = vunpack.c.h.bf16 %v105
    %v154 = vunpack.c.l.bf16 %v106
    %155 = vmatprep.subr.mxu0 %v153
    %156 = vmatpush1.msra.mxu0 %v152
    %157 = vmatprep.subr.mxu0 %v150
    %158 = vmatpush1.msra.mxu0 %v149
    %159 = vmatprep.subr.mxu0 %v147
    %160 = vmatpush1.msra.mxu0 %v146
    %161 = vmatprep.subr.mxu0 %v144
    %162 = vmatpush1.msra.mxu0 %v143
    %163 = vmatprep.subr.mxu0 %v141
    %164 = vmatpush1.msra.mxu0 %v140
    %165 = vmatprep.subr.mxu0 %v138
    %166 = vmatpush1.msra.mxu0 %v137
    %167 = vmatprep.subr.mxu0 %v135
    %168 = vmatpush1.msra.mxu0 %v134
    %169 = vmatprep.subr.mxu0 %v132
    %170 = vmatpush1.msra.mxu0 %v131
    %171 = vmatprep.subr.mxu0 %v129
    %172 = vmatpush1.msra.mxu0 %v128
    %173 = vmatprep.subr.mxu0 %v126
    %174 = vmatpush1.msra.mxu0 %v125
    %175 = vmatprep.subr.mxu0 %v123
    %176 = vmatpush1.msra.mxu0 %v122
    %177 = vmatprep.subr.mxu0 %v120
    %178 = vmatpush1.msra.mxu0 %v119
    %179 = vmatprep.subr.mxu0 %v117
    %180 = vmatpush1.msra.mxu0 %v116
    %181 = vmatprep.subr.mxu0 %v114
    %182 = vmatpush1.msra.mxu0 %v113
    %183 = vmatprep.subr.mxu0 %v111
    %184 = vmatpush1.msra.mxu0 %v110
    %185 = vmatprep.subr.mxu0 %v108
    %186 = vmatpush1.msra.mxu0 %v107
    %187 = vmatprep.subr.mxu0 0.0
    %188 = vmatpush2.msra.mxu0 0.0
    %189 = vmatprep.subr.mxu0 0.0
    %190 = vmatpush2.msra.mxu0 0.0
    %191 = vmatprep.subr.mxu0 0.0
    %192 = vmatpush2.msra.mxu0 0.0
    %193 = vmatprep.subr.mxu0 0.0
    %194 = vmatpush2.msra.mxu0 0.0
    %195 = vmatprep.subr.mxu0 0.0
    %196 = vmatpush2.msra.mxu0 0.0
    %197 = vmatprep.subr.mxu0 0.0
    %198 = vmatpush2.msra.mxu0 0.0
    %199 = vmatprep.subr.mxu0 0.0
    %200 = vmatpush2.msra.mxu0 0.0
    %201 = vmatprep.subr.mxu0 0.0
    %202 = vmatpush2.msra.mxu0 0.0
    %203 = vmatprep.subr.mxu0 0.0
    %204 = vmatpush2.msra.mxu0 0.0
    %205 = vmatprep.subr.mxu0 0.0
    %206 = vmatpush2.msra.mxu0 0.0
    %207 = vmatprep.subr.mxu0 0.0
    %208 = vmatpush2.msra.mxu0 0.0
    %209 = vmatprep.subr.mxu0 0.0
    %210 = vmatpush2.msra.mxu0 0.0
    %211 = vmatprep.subr.mxu0 0.0
    %212 = vmatpush2.msra.mxu0 0.0
    %213 = vmatprep.subr.mxu0 0.0
    %214 = vmatpush2.msra.mxu0 0.0
    %215 = vmatprep.subr.mxu0 0.0
    %216 = vmatpush2.msra.mxu0 0.0
    %217 = vmatprep.subr.mxu0 0.0
    %218 = vmatpush2.msra.mxu0 0.0
    %219 = vmatprep.mubr.f32.mxu0 0.0
    %220 = vmatmul.mubr.f32.gmra.mxu0 %v71
    %v221 = vpop.f32.mrf.mxu0
    %v222 = vadd.f32 0.0, %v221
    %v223 = vpop.f32.mrf.mxu0
    %v224 = vadd.f32 0.0, %v223
    %225 = vdwg.mxu0
    %226 = vmatprep.subr.mxu0 0.0
    %227 = vmatpush1.msra.mxu0 %v154
    %228 = vmatprep.subr.mxu0 0.0
    %229 = vmatpush1.msra.mxu0 %v151
    %230 = vmatprep.subr.mxu0 0.0
    %231 = vmatpush1.msra.mxu0 %v148
    %232 = vmatprep.subr.mxu0 0.0
    %233 = vmatpush1.msra.mxu0 %v145
    %234 = vmatprep.subr.mxu0 0.0
    %235 = vmatpush1.msra.mxu0 %v142
    %236 = vmatprep.subr.mxu0 0.0
    %237 = vmatpush1.msra.mxu0 %v139
    %238 = vmatprep.subr.mxu0 0.0
    %239 = vmatpush1.msra.mxu0 %v136
    %240 = vmatprep.subr.mxu0 0.0
    %241 = vmatpush1.msra.mxu0 %v133
    %242 = vmatprep.subr.mxu0 0.0
    %243 = vmatpush1.msra.mxu0 %v130
    %244 = vmatprep.subr.mxu0 0.0
    %245 = vmatpush1.msra.mxu0 %v127
    %246 = vmatprep.subr.mxu0 0.0
    %247 = vmatpush1.msra.mxu0 %v124
    %248 = vmatprep.subr.mxu0 0.0
    %249 = vmatpush1.msra.mxu0 %v121
    %250 = vmatprep.subr.mxu0 0.0
    %251 = vmatpush1.msra.mxu0 %v118
    %252 = vmatprep.subr.mxu0 0.0
    %253 = vmatpush1.msra.mxu0 %v115
    %254 = vmatprep.subr.mxu0 0.0
    %255 = vmatpush1.msra.mxu0 %v112
    %256 = vmatprep.subr.mxu0 0.0
    %257 = vmatpush1.msra.mxu0 %v109
    %258 = vmatprep.subr.mxu0 0.0
    %259 = vmatpush2.msra.mxu0 0.0
    %260 = vmatprep.subr.mxu0 0.0
    %261 = vmatpush2.msra.mxu0 0.0
    %262 = vmatprep.subr.mxu0 0.0
    %263 = vmatpush2.msra.mxu0 0.0
    %264 = vmatprep.subr.mxu0 0.0
    %265 = vmatpush2.msra.mxu0 0.0
    %266 = vmatprep.subr.mxu0 0.0
    %267 = vmatpush2.msra.mxu0 0.0
    %268 = vmatprep.subr.mxu0 0.0
    %269 = vmatpush2.msra.mxu0 0.0
    %270 = vmatprep.subr.mxu0 0.0
    %271 = vmatpush2.msra.mxu0 0.0
    %272 = vmatprep.subr.mxu0 0.0
    %273 = vmatpush2.msra.mxu0 0.0
    %274 = vmatprep.subr.mxu0 0.0
    %275 = vmatpush2.msra.mxu0 0.0
    %276 = vmatprep.subr.mxu0 0.0
    %277 = vmatpush2.msra.mxu0 0.0
    %278 = vmatprep.subr.mxu0 0.0
    %279 = vmatpush2.msra.mxu0 0.0
    %280 = vmatprep.subr.mxu0 0.0
    %281 = vmatpush2.msra.mxu0 0.0
    %282 = vmatprep.subr.mxu0 0.0
    %283 = vmatpush2.msra.mxu0 0.0
    %284 = vmatprep.subr.mxu0 0.0
    %285 = vmatpush2.msra.mxu0 0.0
    %286 = vmatprep.subr.mxu0 0.0
    %287 = vmatpush2.msra.mxu0 0.0
    %288 = vmatprep.subr.mxu0 0.0
    %289 = vmatpush2.msra.mxu0 0.0
    %290 = vmatprep.mubr.f32.mxu0 0.0
    %291 = vmatmul.mubr.f32.gmra.mxu0 %v71
    %v292 = vpop.f32.mrf.mxu0
    %v293 = vadd.f32 0.0, %v292
    %v294 = vpop.f32.mrf.mxu0
    %295 = vdwg.mxu0
    %v296 = vadd.f32 %v222, %v72
    %v297 = vxor.u32 %v296, 2147483648
    %v298 = vmul.f32 %v297, 1.442695
    %v299 = vpow.pop %v298
    %v300 = vadd.f32 %v299, 1.0
    %v301 = vrcp.pop %v300
    %v302 = vmul.f32 1.0, %v301
    %v304 = vcombine.high %v72, %v72
    %v306 = vadd.f32 %v224, %v304
    %v307 = vxor.u32 %v306, 2147483648
    %v308 = vmul.f32 %v307, 1.442695
    %v309 = vpow.pop %v308
    %v310 = vadd.f32 %v309, 1.0
    %v311 = vrcp.pop %v310
    %v312 = vmul.f32 1.0, %v311
    %v313 = vmul.f32 %v302, %v73
    %v314 = vadd.f32 %v293, %v313
    %v315 = vtanh.pop %v314
    %v316 = vsub.f32 1.0, %v312
    %v317 = vmul.f32 %v316, %v315
    %v318 = vmul.f32 %v312, %v74
    %v319 = vadd.f32 %v317, %v318
    %v320 = vmax.f32 %v319, 0.0
    %v321 = vld [vmem:[#allocation7] sm:$0xf]
    %v322 = vld [vmem:[#allocation7 + $0x4] sm:$0xf]
    %v323 = vld [vmem:[#allocation7 + $0x8] sm:$0xf]
    %v324 = vld [vmem:[#allocation7 + $0xc] sm:$0xf]
    %v325 = vld [vmem:[#allocation7 + $0x10] sm:$0xf]
    %v326 = vld [vmem:[#allocation7 + $0x14] sm:$0xf]
    %v327 = vld [vmem:[#allocation7 + $0x18] sm:$0xf]
    %v328 = vld [vmem:[#allocation7 + $0x1c] sm:$0xf]
    %v329 = vld [vmem:[#allocation7 + $0x20] sm:$0xf]
    %v330 = vld [vmem:[#allocation7 + $0x24] sm:$0xf]
    %v331 = vld [vmem:[#allocation7 + $0x28] sm:$0xf]
    %v332 = vld [vmem:[#allocation7 + $0x2c] sm:$0xf]
    %v333 = vld [vmem:[#allocation7 + $0x30] sm:$0xf]
    %v334 = vld [vmem:[#allocation7 + $0x34] sm:$0xf]
    %v335 = vld [vmem:[#allocation7 + $0x38] sm:$0xf]
    %v336 = vld [vmem:[#allocation7 + $0x3c] sm:$0xf]
    %v337 = vunpack.c.l.bf16 %v321
    %v338 = vunpack.c.l.bf16 %v322
    %v339 = vunpack.c.l.bf16 %v323
    %v340 = vunpack.c.l.bf16 %v324
    %v341 = vunpack.c.l.bf16 %v325
    %v342 = vunpack.c.l.bf16 %v326
    %v343 = vunpack.c.l.bf16 %v327
    %v344 = vunpack.c.l.bf16 %v328
    %v345 = vunpack.c.l.bf16 %v329
    %v346 = vunpack.c.l.bf16 %v330
    %v347 = vunpack.c.l.bf16 %v331
    %v348 = vunpack.c.l.bf16 %v332
    %v349 = vunpack.c.l.bf16 %v333
    %v350 = vunpack.c.l.bf16 %v334
    %v351 = vunpack.c.l.bf16 %v335
    %v352 = vunpack.c.l.bf16 %v336
    %353 = vmatprep.subr.mxu0 0.0
    %354 = vmatpush1.msra.mxu0 %v352
    %355 = vmatprep.subr.mxu0 0.0
    %356 = vmatpush1.msra.mxu0 %v351
    %357 = vmatprep.subr.mxu0 0.0
    %358 = vmatpush1.msra.mxu0 %v350
    %359 = vmatprep.subr.mxu0 0.0
    %360 = vmatpush1.msra.mxu0 %v349
    %361 = vmatprep.subr.mxu0 0.0
    %362 = vmatpush1.msra.mxu0 %v348
    %363 = vmatprep.subr.mxu0 0.0
    %364 = vmatpush1.msra.mxu0 %v347
    %365 = vmatprep.subr.mxu0 0.0
    %366 = vmatpush1.msra.mxu0 %v346
    %367 = vmatprep.subr.mxu0 0.0
    %368 = vmatpush1.msra.mxu0 %v345
    %369 = vmatprep.subr.mxu0 0.0
    %370 = vmatpush1.msra.mxu0 %v344
    %371 = vmatprep.subr.mxu0 0.0
    %372 = vmatpush1.msra.mxu0 %v343
    %373 = vmatprep.subr.mxu0 0.0
    %374 = vmatpush1.msra.mxu0 %v342
    %375 = vmatprep.subr.mxu0 0.0
    %376 = vmatpush1.msra.mxu0 %v341
    %377 = vmatprep.subr.mxu0 0.0
    %378 = vmatpush1.msra.mxu0 %v340
    %379 = vmatprep.subr.mxu0 0.0
    %380 = vmatpush1.msra.mxu0 %v339
    %381 = vmatprep.subr.mxu0 0.0
    %382 = vmatpush1.msra.mxu0 %v338
    %383 = vmatprep.subr.mxu0 0.0
    %384 = vmatpush1.msra.mxu0 %v337
    %385 = vmatprep.subr.mxu0 0.0
    %386 = vmatpush2.msra.mxu0 0.0
    %387 = vmatprep.subr.mxu0 0.0
    %388 = vmatpush2.msra.mxu0 0.0
    %389 = vmatprep.subr.mxu0 0.0
    %390 = vmatpush2.msra.mxu0 0.0
    %391 = vmatprep.subr.mxu0 0.0
    %392 = vmatpush2.msra.mxu0 0.0
    %393 = vmatprep.subr.mxu0 0.0
    %394 = vmatpush2.msra.mxu0 0.0
    %395 = vmatprep.subr.mxu0 0.0
    %396 = vmatpush2.msra.mxu0 0.0
    %397 = vmatprep.subr.mxu0 0.0
    %398 = vmatpush2.msra.mxu0 0.0
    %399 = vmatprep.subr.mxu0 0.0
    %400 = vmatpush2.msra.mxu0 0.0
    %401 = vmatprep.subr.mxu0 0.0
    %402 = vmatpush2.msra.mxu0 0.0
    %403 = vmatprep.subr.mxu0 0.0
    %404 = vmatpush2.msra.mxu0 0.0
    %405 = vmatprep.subr.mxu0 0.0
    %406 = vmatpush2.msra.mxu0 0.0
    %407 = vmatprep.subr.mxu0 0.0
    %408 = vmatpush2.msra.mxu0 0.0
    %409 = vmatprep.subr.mxu0 0.0
    %410 = vmatpush2.msra.mxu0 0.0
    %411 = vmatprep.subr.mxu0 0.0
    %412 = vmatpush2.msra.mxu0 0.0
    %413 = vmatprep.subr.mxu0 0.0
    %414 = vmatpush2.msra.mxu0 0.0
    %415 = vmatprep.subr.mxu0 0.0
    %416 = vmatpush2.msra.mxu0 0.0
    %417 = vmatprep.mubr.f32.mxu0 0.0
    %418 = vmatmul.mubr.f32.gmra.mxu0 %v320
    %v419 = vpop.f32.mrf.mxu0
    %v420 = vadd.f32 0.0, %v419
    %v421 = vpop.f32.mrf.mxu0
    %422 = vdwg.mxu0
    %v424 = vrot.slane %v420, 1
    %425 = vrot.lane.b32.xlu0 %v424, 96
    %v426 = vpop.permute.xlu0 %425
    %v428 = vadd.f32 %v420, %v426
    %v429 = vld [vmem:[#allocation8 + $0x60] sm:$0x1]
    %v430 = vadd.f32 %v428, %v429
    %v431 = vld [vmem:[#allocation8 + $0x61] sm:$0x1]
    %v433 = vrot.slane %v431, 6
    %434 = vrot.lane.b32.xlu0 %v433, 64
    %v435 = vpop.permute.xlu0 %434
    %v437 = vadd.f32 %v420, %v435
    %v439 = vrot.slane %v437, 1
    %440 = vrot.lane.b32.xlu0 %v439, 64
    %v441 = vpop.permute.xlu0 %440
    %vm443 = vcmask 1040384
    %v444 = vsel %vm443, %v430, %v441
    %v445 = vld [vmem:[#allocation8] sm:$0xff]
    %v446 = vld [vmem:[#allocation8 + $0x8] sm:$0xff]
    %v447 = vld [vmem:[#allocation8 + $0x10] sm:$0xff]
    %v448 = vld [vmem:[#allocation8 + $0x18] sm:$0xff]
    %v449 = vld [vmem:[#allocation7 + $0xa0] sm:$0xf]
    %v450 = vld [vmem:[#allocation7 + $0xa4] sm:$0xf]
    %v451 = vld [vmem:[#allocation7 + $0xa8] sm:$0xf]
    %v452 = vld [vmem:[#allocation7 + $0xac] sm:$0xf]
    %v453 = vunpack.c.l.bf16 %v449
    %v454 = vunpack.c.l.bf16 %v450
    %v455 = vunpack.c.l.bf16 %v451
    %v456 = vunpack.c.l.bf16 %v452
    %v457 = vld [vmem:[#allocation8 + $0x20] sm:$0xff]
    %v458 = vld [vmem:[#allocation8 + $0x28] sm:$0xff]
    %v459 = vld [vmem:[#allocation8 + $0x30] sm:$0xff]
    %v460 = vld [vmem:[#allocation8 + $0x38] sm:$0xff]
    %vm461 = vcmask 261120
    %v463 = vsel %vm461, %v445, 0
    %v466 = vsel %vm461, %v446, 0
    %v469 = vsel %vm461, %v447, 0
    %v472 = vsel %vm461, %v448, 0
    %474 = vmatprep.subr.mxu0 0.0
    %475 = vmatpush1.msra.mxu0 0.0
    %476 = vmatprep.subr.mxu0 0.0
    %477 = vmatpush1.msra.mxu0 0.0
    %478 = vmatprep.subr.mxu0 0.0
    %479 = vmatpush1.msra.mxu0 0.0
    %480 = vmatprep.subr.mxu0 0.0
    %481 = vmatpush1.msra.mxu0 0.0
    %482 = vmatprep.subr.mxu0 0.0
    %483 = vmatpush1.msra.mxu0 0.0
    %484 = vmatprep.subr.mxu0 0.0
    %485 = vmatpush1.msra.mxu0 0.0
    %486 = vmatprep.subr.mxu0 0.0
    %487 = vmatpush1.msra.mxu0 0.0
    %488 = vmatprep.subr.mxu0 0.0
    %489 = vmatpush1.msra.mxu0 0.0
    %490 = vmatprep.subr.mxu0 0.0
    %491 = vmatpush1.msra.mxu0 0.0
    %492 = vmatprep.subr.mxu0 0.0
    %493 = vmatpush1.msra.mxu0 0.0
    %494 = vmatprep.subr.mxu0 0.0
    %495 = vmatpush1.msra.mxu0 0.0
    %496 = vmatprep.subr.mxu0 0.0
    %497 = vmatpush1.msra.mxu0 0.0
    %498 = vmatprep.subr.mxu0 0.0
    %499 = vmatpush1.msra.mxu0 %v456
    %500 = vmatprep.subr.mxu0 0.0
    %501 = vmatpush1.msra.mxu0 %v455
    %502 = vmatprep.subr.mxu0 0.0
    %503 = vmatpush1.msra.mxu0 %v454
    %504 = vmatprep.subr.mxu0 0.0
    %505 = vmatpush1.msra.mxu0 %v453
    %506 = vmatprep.subr.mxu0 0.0
    %507 = vmatpush2.msra.mxu0 0.0
    %508 = vmatprep.subr.mxu0 0.0
    %509 = vmatpush2.msra.mxu0 0.0
    %510 = vmatprep.subr.mxu0 0.0
    %511 = vmatpush2.msra.mxu0 0.0
    %512 = vmatprep.subr.mxu0 0.0
    %513 = vmatpush2.msra.mxu0 0.0
    %514 = vmatprep.subr.mxu0 0.0
    %515 = vmatpush2.msra.mxu0 0.0
    %516 = vmatprep.subr.mxu0 0.0
    %517 = vmatpush2.msra.mxu0 0.0
    %518 = vmatprep.subr.mxu0 0.0
    %519 = vmatpush2.msra.mxu0 0.0
    %520 = vmatprep.subr.mxu0 0.0
    %521 = vmatpush2.msra.mxu0 0.0
    %522 = vmatprep.subr.mxu0 0.0
    %523 = vmatpush2.msra.mxu0 0.0
    %524 = vmatprep.subr.mxu0 0.0
    %525 = vmatpush2.msra.mxu0 0.0
    %526 = vmatprep.subr.mxu0 0.0
    %527 = vmatpush2.msra.mxu0 0.0
    %528 = vmatprep.subr.mxu0 0.0
    %529 = vmatpush2.msra.mxu0 0.0
    %530 = vmatprep.subr.mxu0 0.0
    %531 = vmatpush2.msra.mxu0 0.0
    %532 = vmatprep.subr.mxu0 0.0
    %533 = vmatpush2.msra.mxu0 0.0
    %534 = vmatprep.subr.mxu0 0.0
    %535 = vmatpush2.msra.mxu0 0.0
    %536 = vmatprep.subr.mxu0 0.0
    %537 = vmatpush2.msra.mxu0 0.0
    %538 = vmatprep.mubr.f32.mxu0 0.0
    %539 = vmatmul.mubr.f32.gmra.mxu0 %v463
    %v540 = vpop.f32.mrf.mxu0
    %v541 = vadd.f32 %v457, %v540
    %v542 = vpop.f32.mrf.mxu0
    %543 = vmatprep.mubr.f32.mxu0 0.0
    %544 = vmatmul.mubr.f32.gmra.mxu0 %v466
    %v545 = vpop.f32.mrf.mxu0
    %v546 = vadd.f32 %v458, %v545
    %v547 = vpop.f32.mrf.mxu0
    %548 = vmatprep.mubr.f32.mxu0 0.0
    %549 = vmatmul.mubr.f32.gmra.mxu0 %v469
    %v550 = vpop.f32.mrf.mxu0
    %v551 = vadd.f32 %v459, %v550
    %v552 = vpop.f32.mrf.mxu0
    %553 = vmatprep.mubr.f32.mxu0 0.0
    %554 = vmatmul.mubr.f32.gmra.mxu0 %v472
    %v555 = vpop.f32.mrf.mxu0
    %v556 = vadd.f32 %v460, %v555
    %v557 = vpop.f32.mrf.mxu0
    %558 = vdwg.mxu0
    %v559 = vmax.f32 %v541, 0.0
    %v560 = vmax.f32 %v546, 0.0
    %v561 = vmax.f32 %v551, 0.0
    %v562 = vmax.f32 %v556, 0.0
    %v563 = vld [vmem:[#allocation7 + $0xb0] sm:$0xf]
    %v564 = vld [vmem:[#allocation7 + $0xb4] sm:$0xf]
    %v565 = vld [vmem:[#allocation7 + $0xb8] sm:$0xf]
    %v566 = vld [vmem:[#allocation7 + $0xbc] sm:$0xf]
    %v567 = vunpack.c.l.bf16 %v563
    %v568 = vunpack.c.l.bf16 %v564
    %v569 = vunpack.c.l.bf16 %v565
    %v570 = vunpack.c.l.bf16 %v566
    %v572 = vsel %vm461, %v559, 0
    %v575 = vsel %vm461, %v560, 0
    %577 = vmatprep.subr.mxu0 0.0
    %578 = vmatpush1.msra.mxu0 0.0
    %579 = vmatprep.subr.mxu0 0.0
    %580 = vmatpush1.msra.mxu0 0.0
    %581 = vmatprep.subr.mxu0 0.0
    %582 = vmatpush1.msra.mxu0 0.0
    %583 = vmatprep.subr.mxu0 0.0
    %584 = vmatpush1.msra.mxu0 0.0
    %585 = vmatprep.subr.mxu0 0.0
    %586 = vmatpush1.msra.mxu0 0.0
    %587 = vmatprep.subr.mxu0 0.0
    %588 = vmatpush1.msra.mxu0 0.0
    %589 = vmatprep.subr.mxu0 0.0
    %590 = vmatpush1.msra.mxu0 0.0
    %591 = vmatprep.subr.mxu0 0.0
    %592 = vmatpush1.msra.mxu0 0.0
    %593 = vmatprep.subr.mxu0 0.0
    %594 = vmatpush1.msra.mxu0 0.0
    %595 = vmatprep.subr.mxu0 0.0
    %596 = vmatpush1.msra.mxu0 0.0
    %597 = vmatprep.subr.mxu0 0.0
    %598 = vmatpush1.msra.mxu0 0.0
    %599 = vmatprep.subr.mxu0 0.0
    %600 = vmatpush1.msra.mxu0 0.0
    %601 = vmatprep.subr.mxu0 0.0
    %602 = vmatpush1.msra.mxu0 %v570
    %603 = vmatprep.subr.mxu0 0.0
    %604 = vmatpush1.msra.mxu0 %v569
    %605 = vmatprep.subr.mxu0 0.0
    %606 = vmatpush1.msra.mxu0 %v568
    %607 = vmatprep.subr.mxu0 0.0
    %608 = vmatpush1.msra.mxu0 %v567
    %609 = vmatprep.subr.mxu0 0.0
    %610 = vmatpush2.msra.mxu0 0.0
    %611 = vmatprep.subr.mxu0 0.0
    %612 = vmatpush2.msra.mxu0 0.0
    %613 = vmatprep.subr.mxu0 0.0
    %614 = vmatpush2.msra.mxu0 0.0
    %615 = vmatprep.subr.mxu0 0.0
    %616 = vmatpush2.msra.mxu0 0.0
    %617 = vmatprep.subr.mxu0 0.0
    %618 = vmatpush2.msra.mxu0 0.0
    %619 = vmatprep.subr.mxu0 0.0
    %620 = vmatpush2.msra.mxu0 0.0
    %621 = vmatprep.subr.mxu0 0.0
    %622 = vmatpush2.msra.mxu0 0.0
    %623 = vmatprep.subr.mxu0 0.0
    %624 = vmatpush2.msra.mxu0 0.0
    %625 = vmatprep.subr.mxu0 0.0
    %626 = vmatpush2.msra.mxu0 0.0
    %627 = vmatprep.subr.mxu0 0.0
    %628 = vmatpush2.msra.mxu0 0.0
    %629 = vmatprep.subr.mxu0 0.0
    %630 = vmatpush2.msra.mxu0 0.0
    %631 = vmatprep.subr.mxu0 0.0
    %632 = vmatpush2.msra.mxu0 0.0
    %633 = vmatprep.subr.mxu0 0.0
    %634 = vmatpush2.msra.mxu0 0.0
    %635 = vmatprep.subr.mxu0 0.0
    %636 = vmatpush2.msra.mxu0 0.0
    %637 = vmatprep.subr.mxu0 0.0
    %638 = vmatpush2.msra.mxu0 0.0
    %639 = vmatprep.subr.mxu0 0.0
    %640 = vmatpush2.msra.mxu0 0.0
    %641 = vmatprep.mubr.f32.mxu0 0.0
    %642 = vmatmul.mubr.f32.gmra.mxu0 %v572
    %v643 = vpop.f32.mrf.mxu0
    %v644 = vadd.f32 0.0, %v643
    %v645 = vpop.f32.mrf.mxu0
    %646 = vmatprep.mubr.f32.mxu0 0.0
    %647 = vmatmul.mubr.f32.gmra.mxu0 %v575
    %v648 = vpop.f32.mrf.mxu0
    %v649 = vadd.f32 0.0, %v648
    %v650 = vpop.f32.mrf.mxu0
    %651 = vdwg.mxu0
    %v652 = vld [vmem:[#allocation7 + $0xc0] sm:$0xf]
    %v653 = vld [vmem:[#allocation7 + $0xc4] sm:$0xf]
    %v654 = vld [vmem:[#allocation7 + $0xc8] sm:$0xf]
    %v655 = vld [vmem:[#allocation7 + $0xcc] sm:$0xf]
    %v656 = vunpack.c.l.bf16 %v652
    %v657 = vunpack.c.l.bf16 %v653
    %v658 = vunpack.c.l.bf16 %v654
    %v659 = vunpack.c.l.bf16 %v655
    %v661 = vsel %vm461, %v561, 0
    %v664 = vsel %vm461, %v562, 0
    %666 = vmatprep.subr.mxu0 0.0
    %667 = vmatpush1.msra.mxu0 0.0
    %668 = vmatprep.subr.mxu0 0.0
    %669 = vmatpush1.msra.mxu0 0.0
    %670 = vmatprep.subr.mxu0 0.0
    %671 = vmatpush1.msra.mxu0 0.0
    %672 = vmatprep.subr.mxu0 0.0
    %673 = vmatpush1.msra.mxu0 0.0
    %674 = vmatprep.subr.mxu0 0.0
    %675 = vmatpush1.msra.mxu0 0.0
    %676 = vmatprep.subr.mxu0 0.0
    %677 = vmatpush1.msra.mxu0 0.0
    %678 = vmatprep.subr.mxu0 0.0
    %679 = vmatpush1.msra.mxu0 0.0
    %680 = vmatprep.subr.mxu0 0.0
    %681 = vmatpush1.msra.mxu0 0.0
    %682 = vmatprep.subr.mxu0 0.0
    %683 = vmatpush1.msra.mxu0 0.0
    %684 = vmatprep.subr.mxu0 0.0
    %685 = vmatpush1.msra.mxu0 0.0
    %686 = vmatprep.subr.mxu0 0.0
    %687 = vmatpush1.msra.mxu0 0.0
    %688 = vmatprep.subr.mxu0 0.0
    %689 = vmatpush1.msra.mxu0 0.0
    %690 = vmatprep.subr.mxu0 0.0
    %691 = vmatpush1.msra.mxu0 %v659
    %692 = vmatprep.subr.mxu0 0.0
    %693 = vmatpush1.msra.mxu0 %v658
    %694 = vmatprep.subr.mxu0 0.0
    %695 = vmatpush1.msra.mxu0 %v657
    %696 = vmatprep.subr.mxu0 0.0
    %697 = vmatpush1.msra.mxu0 %v656
    %698 = vmatprep.subr.mxu0 0.0
    %699 = vmatpush2.msra.mxu0 0.0
    %700 = vmatprep.subr.mxu0 0.0
    %701 = vmatpush2.msra.mxu0 0.0
    %702 = vmatprep.subr.mxu0 0.0
    %703 = vmatpush2.msra.mxu0 0.0
    %704 = vmatprep.subr.mxu0 0.0
    %705 = vmatpush2.msra.mxu0 0.0
    %706 = vmatprep.subr.mxu0 0.0
    %707 = vmatpush2.msra.mxu0 0.0
    %708 = vmatprep.subr.mxu0 0.0
    %709 = vmatpush2.msra.mxu0 0.0
    %710 = vmatprep.subr.mxu0 0.0
    %711 = vmatpush2.msra.mxu0 0.0
    %712 = vmatprep.subr.mxu0 0.0
    %713 = vmatpush2.msra.mxu0 0.0
    %714 = vmatprep.subr.mxu0 0.0
    %715 = vmatpush2.msra.mxu0 0.0
    %716 = vmatprep.subr.mxu0 0.0
    %717 = vmatpush2.msra.mxu0 0.0
    %718 = vmatprep.subr.mxu0 0.0
    %719 = vmatpush2.msra.mxu0 0.0
    %720 = vmatprep.subr.mxu0 0.0
    %721 = vmatpush2.msra.mxu0 0.0
    %722 = vmatprep.subr.mxu0 0.0
    %723 = vmatpush2.msra.mxu0 0.0
    %724 = vmatprep.subr.mxu0 0.0
    %725 = vmatpush2.msra.mxu0 0.0
    %726 = vmatprep.subr.mxu0 0.0
    %727 = vmatpush2.msra.mxu0 0.0
    %728 = vmatprep.subr.mxu0 0.0
    %729 = vmatpush2.msra.mxu0 0.0
    %730 = vmatprep.mubr.f32.mxu0 0.0
    %731 = vmatmul.mubr.f32.gmra.mxu0 %v661
    %v732 = vpop.f32.mrf.mxu0
    %v733 = vadd.f32 0.0, %v732
    %v734 = vpop.f32.mrf.mxu0
    %735 = vmatprep.mubr.f32.mxu0 0.0
    %736 = vmatmul.mubr.f32.gmra.mxu0 %v664
    %v737 = vpop.f32.mrf.mxu0
    %v738 = vadd.f32 0.0, %v737
    %v739 = vpop.f32.mrf.mxu0
    %740 = vdwg.mxu0
    %v741 = vld [vmem:[#allocation8 + $0x40] sm:$0xff]
    %v742 = vld [vmem:[#allocation8 + $0x48] sm:$0xff]
    %v743 = vld [vmem:[#allocation8 + $0x50] sm:$0xff]
    %v744 = vld [vmem:[#allocation8 + $0x58] sm:$0xff]
    %745 = vmatprep.subr.mxu0 0.0
    %746 = vmatpush1.msra.mxu0 0.0
    %747 = vmatprep.subr.mxu0 0.0
    %748 = vmatpush1.msra.mxu0 0.0
    %749 = vmatprep.subr.mxu0 0.0
    %750 = vmatpush1.msra.mxu0 0.0
    %751 = vmatprep.subr.mxu0 0.0
    %752 = vmatpush1.msra.mxu0 0.0
    %753 = vmatprep.subr.mxu0 0.0
    %754 = vmatpush1.msra.mxu0 0.0
    %755 = vmatprep.subr.mxu0 0.0
    %756 = vmatpush1.msra.mxu0 0.0
    %757 = vmatprep.subr.mxu0 0.0
    %758 = vmatpush1.msra.mxu0 0.0
    %759 = vmatprep.subr.mxu0 0.0
    %760 = vmatpush1.msra.mxu0 0.0
    %761 = vmatprep.subr.mxu0 0.0
    %762 = vmatpush1.msra.mxu0 0.0
    %763 = vmatprep.subr.mxu0 0.0
    %764 = vmatpush1.msra.mxu0 0.0
    %765 = vmatprep.subr.mxu0 0.0
    %766 = vmatpush1.msra.mxu0 0.0
    %767 = vmatprep.subr.mxu0 0.0
    %768 = vmatpush1.msra.mxu0 0.0
    %769 = vmatprep.subr.mxu0 0.0
    %770 = vmatpush1.msra.mxu0 %v738
    %771 = vmatprep.subr.mxu0 0.0
    %772 = vmatpush1.msra.mxu0 %v733
    %773 = vmatprep.subr.mxu0 0.0
    %774 = vmatpush1.msra.mxu0 %v649
    %775 = vmatprep.subr.mxu0 0.0
    %776 = vmatpush1.msra.mxu0 %v644
    %777 = vmatprep.subr.mxu0 0.0
    %778 = vmatpush2.msra.mxu0 0.0
    %779 = vmatprep.subr.mxu0 0.0
    %780 = vmatpush2.msra.mxu0 0.0
    %781 = vmatprep.subr.mxu0 0.0
    %782 = vmatpush2.msra.mxu0 0.0
    %783 = vmatprep.subr.mxu0 0.0
    %784 = vmatpush2.msra.mxu0 0.0
    %785 = vmatprep.subr.mxu0 0.0
    %786 = vmatpush2.msra.mxu0 0.0
    %787 = vmatprep.subr.mxu0 0.0
    %788 = vmatpush2.msra.mxu0 0.0
    %789 = vmatprep.subr.mxu0 0.0
    %790 = vmatpush2.msra.mxu0 0.0
    %791 = vmatprep.subr.mxu0 0.0
    %792 = vmatpush2.msra.mxu0 0.0
    %793 = vmatprep.subr.mxu0 0.0
    %794 = vmatpush2.msra.mxu0 0.0
    %795 = vmatprep.subr.mxu0 0.0
    %796 = vmatpush2.msra.mxu0 0.0
    %797 = vmatprep.subr.mxu0 0.0
    %798 = vmatpush2.msra.mxu0 0.0
    %799 = vmatprep.subr.mxu0 0.0
    %800 = vmatpush2.msra.mxu0 0.0
    %801 = vmatprep.subr.mxu0 0.0
    %802 = vmatpush2.msra.mxu0 0.0
    %803 = vmatprep.subr.mxu0 0.0
    %804 = vmatpush2.msra.mxu0 0.0
    %805 = vmatprep.subr.mxu0 0.0
    %806 = vmatpush2.msra.mxu0 0.0
    %807 = vmatprep.subr.mxu0 0.0
    %808 = vmatpush2.msra.mxu0 0.0
    %809 = vmatprep.mubr.f32.mxu0 0.0
    %810 = vmatmul.mubr.f32.gmra.mxu0 %v463
    %v811 = vpop.f32.mrf.mxu0
    %v812 = vadd.f32 %v741, %v811
    %v813 = vpop.f32.mrf.mxu0
    %814 = vmatprep.mubr.f32.mxu0 0.0
    %815 = vmatmul.mubr.f32.gmra.mxu0 %v466
    %v816 = vpop.f32.mrf.mxu0
    %v817 = vadd.f32 %v742, %v816
    %v818 = vpop.f32.mrf.mxu0
    %819 = vmatprep.mubr.f32.mxu0 0.0
    %820 = vmatmul.mubr.f32.gmra.mxu0 %v469
    %v821 = vpop.f32.mrf.mxu0
    %v822 = vadd.f32 %v743, %v821
    %v823 = vpop.f32.mrf.mxu0
    %824 = vmatprep.mubr.f32.mxu0 0.0
    %825 = vmatmul.mubr.f32.gmra.mxu0 %v472
    %v826 = vpop.f32.mrf.mxu0
    %v827 = vadd.f32 %v744, %v826
    %v828 = vpop.f32.mrf.mxu0
    %829 = vdwg.mxu0
    %v830 = vld [vmem:[#allocation8 + $0x64] sm:$0x1]
    %s832 = vtos %v830
    %v833 = vstv %s832
    %v835 = vmul.f32 %v822, %v833
    %v836 = vmul.f32 %v827, %v833
    %v837 = vadd.f32 %v812, %v835
    %v838 = vadd.f32 %v817, %v836
    %v840 = vsel %vm461, %v444, 0
    %v843 = vsel %vm461, %v837, 0
    %v846 = vsel %vm461, %v838, 0
    %848 = vmatprep.subr.mxu0 0.0
    %849 = vmatpush1.xpose.msra.mxu0 0.0
    %850 = vmatprep.subr.mxu0 0.0
    %851 = vmatpush1.xpose.msra.mxu0 0.0
    %852 = vmatprep.subr.mxu0 0.0
    %853 = vmatpush1.xpose.msra.mxu0 0.0
    %854 = vmatprep.subr.mxu0 0.0
    %855 = vmatpush1.xpose.msra.mxu0 0.0
    %856 = vmatprep.subr.mxu0 0.0
    %857 = vmatpush1.xpose.msra.mxu0 0.0
    %858 = vmatprep.subr.mxu0 0.0
    %859 = vmatpush1.xpose.msra.mxu0 0.0
    %860 = vmatprep.subr.mxu0 0.0
    %861 = vmatpush1.xpose.msra.mxu0 0.0
    %862 = vmatprep.subr.mxu0 0.0
    %863 = vmatpush1.xpose.msra.mxu0 0.0
    %864 = vmatprep.subr.mxu0 0.0
    %865 = vmatpush1.xpose.msra.mxu0 0.0
    %866 = vmatprep.subr.mxu0 0.0
    %867 = vmatpush1.xpose.msra.mxu0 0.0
    %868 = vmatprep.subr.mxu0 0.0
    %869 = vmatpush1.xpose.msra.mxu0 0.0
    %870 = vmatprep.subr.mxu0 0.0
    %871 = vmatpush1.xpose.msra.mxu0 0.0
    %872 = vmatprep.subr.mxu0 0.0
    %873 = vmatpush1.xpose.msra.mxu0 0.0
    %874 = vmatprep.subr.mxu0 0.0
    %875 = vmatpush1.xpose.msra.mxu0 0.0
    %876 = vmatprep.subr.mxu0 0.0
    %877 = vmatpush1.xpose.msra.mxu0 %v846
    %878 = vmatprep.subr.mxu0 0.0
    %879 = vmatpush1.xpose.msra.mxu0 %v843
    %880 = vmatprep.subr.mxu0 0.0
    %881 = vmatpush2.xpose.msra.mxu0 0.0
    %882 = vmatprep.subr.mxu0 0.0
    %883 = vmatpush2.xpose.msra.mxu0 0.0
    %884 = vmatprep.subr.mxu0 0.0
    %885 = vmatpush2.xpose.msra.mxu0 0.0
    %886 = vmatprep.subr.mxu0 0.0
    %887 = vmatpush2.xpose.msra.mxu0 0.0
    %888 = vmatprep.subr.mxu0 0.0
    %889 = vmatpush2.xpose.msra.mxu0 0.0
    %890 = vmatprep.subr.mxu0 0.0
    %891 = vmatpush2.xpose.msra.mxu0 0.0
    %892 = vmatprep.subr.mxu0 0.0
    %893 = vmatpush2.xpose.msra.mxu0 0.0
    %894 = vmatprep.subr.mxu0 0.0
    %895 = vmatpush2.xpose.msra.mxu0 0.0
    %896 = vmatprep.subr.mxu0 0.0
    %897 = vmatpush2.xpose.msra.mxu0 0.0
    %898 = vmatprep.subr.mxu0 0.0
    %899 = vmatpush2.xpose.msra.mxu0 0.0
    %900 = vmatprep.subr.mxu0 0.0
    %901 = vmatpush2.xpose.msra.mxu0 0.0
    %902 = vmatprep.subr.mxu0 0.0
    %903 = vmatpush2.xpose.msra.mxu0 0.0
    %904 = vmatprep.subr.mxu0 0.0
    %905 = vmatpush2.xpose.msra.mxu0 0.0
    %906 = vmatprep.subr.mxu0 0.0
    %907 = vmatpush2.xpose.msra.mxu0 0.0
    %908 = vmatprep.subr.mxu0 0.0
    %909 = vmatpush2.xpose.msra.mxu0 0.0
    %910 = vmatprep.subr.mxu0 0.0
    %911 = vmatpush2.xpose.msra.mxu0 0.0
    %912 = vmatprep.mubr.f32.mxu0 0.0
    %913 = vmatmul.mubr.f32.gmra.mxu0 %v840
    %v914 = vpop.f32.mrf.mxu0
    %v915 = vadd.f32 0.0, %v914
    %v916 = vpop.f32.mrf.mxu0
    %917 = vdwg.mxu0
    %vm918 = vcmask 130048
    %v920 = vsel %vm918, %v915, 0
    %922 = vmatprep.subr.mxu0 0.0
    %923 = vmatpush1.msra.mxu0 0.0
    %924 = vmatprep.subr.mxu0 0.0
    %925 = vmatpush1.msra.mxu0 0.0
    %926 = vmatprep.subr.mxu0 0.0
    %927 = vmatpush1.msra.mxu0 0.0
    %928 = vmatprep.subr.mxu0 0.0
    %929 = vmatpush1.msra.mxu0 0.0
    %930 = vmatprep.subr.mxu0 0.0
    %931 = vmatpush1.msra.mxu0 0.0
    %932 = vmatprep.subr.mxu0 0.0
    %933 = vmatpush1.msra.mxu0 0.0
    %934 = vmatprep.subr.mxu0 0.0
    %935 = vmatpush1.msra.mxu0 0.0
    %936 = vmatprep.subr.mxu0 0.0
    %937 = vmatpush1.msra.mxu0 0.0
    %938 = vmatprep.subr.mxu0 0.0
    %939 = vmatpush1.msra.mxu0 0.0
    %940 = vmatprep.subr.mxu0 0.0
    %941 = vmatpush1.msra.mxu0 0.0
    %942 = vmatprep.subr.mxu0 0.0
    %943 = vmatpush1.msra.mxu0 0.0
    %944 = vmatprep.subr.mxu0 0.0
    %945 = vmatpush1.msra.mxu0 0.0
    %946 = vmatprep.subr.mxu0 0.0
    %947 = vmatpush1.msra.mxu0 0.0
    %948 = vmatprep.subr.mxu0 0.0
    %949 = vmatpush1.msra.mxu0 0.0
    %950 = vmatprep.subr.mxu0 0.0
    %951 = vmatpush1.msra.mxu0 %v838
    %952 = vmatprep.subr.mxu0 0.0
    %953 = vmatpush1.msra.mxu0 %v837
    %954 = vmatprep.subr.mxu0 0.0
    %955 = vmatpush2.msra.mxu0 0.0
    %956 = vmatprep.subr.mxu0 0.0
    %957 = vmatpush2.msra.mxu0 0.0
    %958 = vmatprep.subr.mxu0 0.0
    %959 = vmatpush2.msra.mxu0 0.0
    %960 = vmatprep.subr.mxu0 0.0
    %961 = vmatpush2.msra.mxu0 0.0
    %962 = vmatprep.subr.mxu0 0.0
    %963 = vmatpush2.msra.mxu0 0.0
    %964 = vmatprep.subr.mxu0 0.0
    %965 = vmatpush2.msra.mxu0 0.0
    %966 = vmatprep.subr.mxu0 0.0
    %967 = vmatpush2.msra.mxu0 0.0
    %968 = vmatprep.subr.mxu0 0.0
    %969 = vmatpush2.msra.mxu0 0.0
    %970 = vmatprep.subr.mxu0 0.0
    %971 = vmatpush2.msra.mxu0 0.0
    %972 = vmatprep.subr.mxu0 0.0
    %973 = vmatpush2.msra.mxu0 0.0
    %974 = vmatprep.subr.mxu0 0.0
    %975 = vmatpush2.msra.mxu0 0.0
    %976 = vmatprep.subr.mxu0 0.0
    %977 = vmatpush2.msra.mxu0 0.0
    %978 = vmatprep.subr.mxu0 0.0
    %979 = vmatpush2.msra.mxu0 0.0
    %980 = vmatprep.subr.mxu0 0.0
    %981 = vmatpush2.msra.mxu0 0.0
    %982 = vmatprep.subr.mxu0 0.0
    %983 = vmatpush2.msra.mxu0 0.0
    %984 = vmatprep.subr.mxu0 0.0
    %985 = vmatpush2.msra.mxu0 0.0
    %986 = vmatprep.mubr.f32.mxu0 0.0
    %987 = vmatmul.mubr.f32.gmra.mxu0 %v920
    %v988 = vpop.f32.mrf.mxu0
    %v989 = vadd.f32 0.0, %v988
    %v990 = vpop.f32.mrf.mxu0
    %991 = vdwg.mxu0
    %v993 = vrot.slane %v989, 6
    %vm995 = vcmask 1041408
    %v996 = vsel %vm995, %v444, %v993
    %v997 = vmax.f32 %v996, 0.0
    %v998 = vld [vmem:[#allocation8 + $0x62] sm:$0x1]
    %v999 = vld [vmem:[#allocation7 + $0x40] sm:$0xf]
    %v1000 = vld [vmem:[#allocation7 + $0x44] sm:$0xf]
    %v1001 = vld [vmem:[#allocation7 + $0x48] sm:$0xf]
    %v1002 = vld [vmem:[#allocation7 + $0x4c] sm:$0xf]
    %v1003 = vunpack.c.l.bf16 %v999
    %v1004 = vunpack.c.l.bf16 %v1000
    %v1005 = vunpack.c.l.bf16 %v1001
    %v1006 = vunpack.c.l.bf16 %v1002
    %v1008 = vsel %vm461, %v997, 0
    %1010 = vmatprep.subr.mxu0 0.0
    %1011 = vmatpush1.msra.mxu0 0.0
    %1012 = vmatprep.subr.mxu0 0.0
    %1013 = vmatpush1.msra.mxu0 0.0
    %1014 = vmatprep.subr.mxu0 0.0
    %1015 = vmatpush1.msra.mxu0 0.0
    %1016 = vmatprep.subr.mxu0 0.0
    %1017 = vmatpush1.msra.mxu0 0.0
    %1018 = vmatprep.subr.mxu0 0.0
    %1019 = vmatpush1.msra.mxu0 0.0
    %1020 = vmatprep.subr.mxu0 0.0
    %1021 = vmatpush1.msra.mxu0 0.0
    %1022 = vmatprep.subr.mxu0 0.0
    %1023 = vmatpush1.msra.mxu0 0.0
    %1024 = vmatprep.subr.mxu0 0.0
    %1025 = vmatpush1.msra.mxu0 0.0
    %1026 = vmatprep.subr.mxu0 0.0
    %1027 = vmatpush1.msra.mxu0 0.0
    %1028 = vmatprep.subr.mxu0 0.0
    %1029 = vmatpush1.msra.mxu0 0.0
    %1030 = vmatprep.subr.mxu0 0.0
    %1031 = vmatpush1.msra.mxu0 0.0
    %1032 = vmatprep.subr.mxu0 0.0
    %1033 = vmatpush1.msra.mxu0 0.0
    %1034 = vmatprep.subr.mxu0 0.0
    %1035 = vmatpush1.msra.mxu0 %v1006
    %1036 = vmatprep.subr.mxu0 0.0
    %1037 = vmatpush1.msra.mxu0 %v1005
    %1038 = vmatprep.subr.mxu0 0.0
    %1039 = vmatpush1.msra.mxu0 %v1004
    %1040 = vmatprep.subr.mxu0 0.0
    %1041 = vmatpush1.msra.mxu0 %v1003
    %1042 = vmatprep.subr.mxu0 0.0
    %1043 = vmatpush2.msra.mxu0 0.0
    %1044 = vmatprep.subr.mxu0 0.0
    %1045 = vmatpush2.msra.mxu0 0.0
    %1046 = vmatprep.subr.mxu0 0.0
    %1047 = vmatpush2.msra.mxu0 0.0
    %1048 = vmatprep.subr.mxu0 0.0
    %1049 = vmatpush2.msra.mxu0 0.0
    %1050 = vmatprep.subr.mxu0 0.0
    %1051 = vmatpush2.msra.mxu0 0.0
    %1052 = vmatprep.subr.mxu0 0.0
    %1053 = vmatpush2.msra.mxu0 0.0
    %1054 = vmatprep.subr.mxu0 0.0
    %1055 = vmatpush2.msra.mxu0 0.0
    %1056 = vmatprep.subr.mxu0 0.0
    %1057 = vmatpush2.msra.mxu0 0.0
    %1058 = vmatprep.subr.mxu0 0.0
    %1059 = vmatpush2.msra.mxu0 0.0
    %1060 = vmatprep.subr.mxu0 0.0
    %1061 = vmatpush2.msra.mxu0 0.0
    %1062 = vmatprep.subr.mxu0 0.0
    %1063 = vmatpush2.msra.mxu0 0.0
    %1064 = vmatprep.subr.mxu0 0.0
    %1065 = vmatpush2.msra.mxu0 0.0
    %1066 = vmatprep.subr.mxu0 0.0
    %1067 = vmatpush2.msra.mxu0 0.0
    %1068 = vmatprep.subr.mxu0 0.0
    %1069 = vmatpush2.msra.mxu0 0.0
    %1070 = vmatprep.subr.mxu0 0.0
    %1071 = vmatpush2.msra.mxu0 0.0
    %1072 = vmatprep.subr.mxu0 0.0
    %1073 = vmatpush2.msra.mxu0 0.0
    %1074 = vmatprep.mubr.f32.mxu0 0.0
    %1075 = vmatmul.mubr.f32.gmra.mxu0 %v1008
    %v1076 = vpop.f32.mrf.mxu0
    %v1077 = vadd.f32 0.0, %v1076
    %v1078 = vpop.f32.mrf.mxu0
    %1079 = vdwg.mxu0
    %v1080 = vadd.f32 %v998, %v1077
    %v1081 = vld [vmem:[#allocation7 + $0x50] sm:$0xf]
    %v1082 = vld [vmem:[#allocation7 + $0x54] sm:$0xf]
    %v1083 = vld [vmem:[#allocation7 + $0x58] sm:$0xf]
    %v1084 = vld [vmem:[#allocation7 + $0x5c] sm:$0xf]
    %v1085 = vunpack.c.l.bf16 %v1081
    %v1086 = vunpack.c.l.bf16 %v1082
    %v1087 = vunpack.c.l.bf16 %v1083
    %v1088 = vunpack.c.l.bf16 %v1084
    %v1089 = vrot.slane %v997, 1
    %v1090 = vsel %vm461, %v1089, 0
    %1092 = vmatprep.subr.mxu0 0.0
    %1093 = vmatpush1.msra.mxu0 0.0
    %1094 = vmatprep.subr.mxu0 0.0
    %1095 = vmatpush1.msra.mxu0 0.0
    %1096 = vmatprep.subr.mxu0 0.0
    %1097 = vmatpush1.msra.mxu0 0.0
    %1098 = vmatprep.subr.mxu0 0.0
    %1099 = vmatpush1.msra.mxu0 0.0
    %1100 = vmatprep.subr.mxu0 0.0
    %1101 = vmatpush1.msra.mxu0 0.0
    %1102 = vmatprep.subr.mxu0 0.0
    %1103 = vmatpush1.msra.mxu0 0.0
    %1104 = vmatprep.subr.mxu0 0.0
    %1105 = vmatpush1.msra.mxu0 0.0
    %1106 = vmatprep.subr.mxu0 0.0
    %1107 = vmatpush1.msra.mxu0 0.0
    %1108 = vmatprep.subr.mxu0 0.0
    %1109 = vmatpush1.msra.mxu0 0.0
    %1110 = vmatprep.subr.mxu0 0.0
    %1111 = vmatpush1.msra.mxu0 0.0
    %1112 = vmatprep.subr.mxu0 0.0
    %1113 = vmatpush1.msra.mxu0 0.0
    %1114 = vmatprep.subr.mxu0 0.0
    %1115 = vmatpush1.msra.mxu0 0.0
    %1116 = vmatprep.subr.mxu0 0.0
    %1117 = vmatpush1.msra.mxu0 %v1088
    %1118 = vmatprep.subr.mxu0 0.0
    %1119 = vmatpush1.msra.mxu0 %v1087
    %1120 = vmatprep.subr.mxu0 0.0
    %1121 = vmatpush1.msra.mxu0 %v1086
    %1122 = vmatprep.subr.mxu0 0.0
    %1123 = vmatpush1.msra.mxu0 %v1085
    %1124 = vmatprep.subr.mxu0 0.0
    %1125 = vmatpush2.msra.mxu0 0.0
    %1126 = vmatprep.subr.mxu0 0.0
    %1127 = vmatpush2.msra.mxu0 0.0
    %1128 = vmatprep.subr.mxu0 0.0
    %1129 = vmatpush2.msra.mxu0 0.0
    %1130 = vmatprep.subr.mxu0 0.0
    %1131 = vmatpush2.msra.mxu0 0.0
    %1132 = vmatprep.subr.mxu0 0.0
    %1133 = vmatpush2.msra.mxu0 0.0
    %1134 = vmatprep.subr.mxu0 0.0
    %1135 = vmatpush2.msra.mxu0 0.0
    %1136 = vmatprep.subr.mxu0 0.0
    %1137 = vmatpush2.msra.mxu0 0.0
    %1138 = vmatprep.subr.mxu0 0.0
    %1139 = vmatpush2.msra.mxu0 0.0
    %1140 = vmatprep.subr.mxu0 0.0
    %1141 = vmatpush2.msra.mxu0 0.0
    %1142 = vmatprep.subr.mxu0 0.0
    %1143 = vmatpush2.msra.mxu0 0.0
    %1144 = vmatprep.subr.mxu0 0.0
    %1145 = vmatpush2.msra.mxu0 0.0
    %1146 = vmatprep.subr.mxu0 0.0
    %1147 = vmatpush2.msra.mxu0 0.0
    %1148 = vmatprep.subr.mxu0 0.0
    %1149 = vmatpush2.msra.mxu0 0.0
    %1150 = vmatprep.subr.mxu0 0.0
    %1151 = vmatpush2.msra.mxu0 0.0
    %1152 = vmatprep.subr.mxu0 0.0
    %1153 = vmatpush2.msra.mxu0 0.0
    %1154 = vmatprep.subr.mxu0 0.0
    %1155 = vmatpush2.msra.mxu0 0.0
    %1156 = vmatprep.mubr.f32.mxu0 0.0
    %1157 = vmatmul.mubr.f32.gmra.mxu0 %v1090
    %v1158 = vpop.f32.mrf.mxu0
    %v1159 = vadd.f32 0.0, %v1158
    %v1160 = vpop.f32.mrf.mxu0
    %1161 = vdwg.mxu0
    %v1162 = vadd.f32 %v1080, %v1159
    %v1163 = vld [vmem:[#allocation7 + $0x60] sm:$0xf]
    %v1164 = vld [vmem:[#allocation7 + $0x64] sm:$0xf]
    %v1165 = vld [vmem:[#allocation7 + $0x68] sm:$0xf]
    %v1166 = vld [vmem:[#allocation7 + $0x6c] sm:$0xf]
    %v1167 = vunpack.c.l.bf16 %v1163
    %v1168 = vunpack.c.l.bf16 %v1164
    %v1169 = vunpack.c.l.bf16 %v1165
    %v1170 = vunpack.c.l.bf16 %v1166
    %v1171 = vrot.slane %v997, 2
    %v1172 = vsel %vm461, %v1171, 0
    %1174 = vmatprep.subr.mxu0 0.0
    %1175 = vmatpush1.msra.mxu0 0.0
    %1176 = vmatprep.subr.mxu0 0.0
    %1177 = vmatpush1.msra.mxu0 0.0
    %1178 = vmatprep.subr.mxu0 0.0
    %1179 = vmatpush1.msra.mxu0 0.0
    %1180 = vmatprep.subr.mxu0 0.0
    %1181 = vmatpush1.msra.mxu0 0.0
    %1182 = vmatprep.subr.mxu0 0.0
    %1183 = vmatpush1.msra.mxu0 0.0
    %1184 = vmatprep.subr.mxu0 0.0
    %1185 = vmatpush1.msra.mxu0 0.0
    %1186 = vmatprep.subr.mxu0 0.0
    %1187 = vmatpush1.msra.mxu0 0.0
    %1188 = vmatprep.subr.mxu0 0.0
    %1189 = vmatpush1.msra.mxu0 0.0
    %1190 = vmatprep.subr.mxu0 0.0
    %1191 = vmatpush1.msra.mxu0 0.0
    %1192 = vmatprep.subr.mxu0 0.0
    %1193 = vmatpush1.msra.mxu0 0.0
    %1194 = vmatprep.subr.mxu0 0.0
    %1195 = vmatpush1.msra.mxu0 0.0
    %1196 = vmatprep.subr.mxu0 0.0
    %1197 = vmatpush1.msra.mxu0 0.0
    %1198 = vmatprep.subr.mxu0 0.0
    %1199 = vmatpush1.msra.mxu0 %v1170
    %1200 = vmatprep.subr.mxu0 0.0
    %1201 = vmatpush1.msra.mxu0 %v1169
    %1202 = vmatprep.subr.mxu0 0.0
    %1203 = vmatpush1.msra.mxu0 %v1168
    %1204 = vmatprep.subr.mxu0 0.0
    %1205 = vmatpush1.msra.mxu0 %v1167
    %1206 = vmatprep.subr.mxu0 0.0
    %1207 = vmatpush2.msra.mxu0 0.0
    %1208 = vmatprep.subr.mxu0 0.0
    %1209 = vmatpush2.msra.mxu0 0.0
    %1210 = vmatprep.subr.mxu0 0.0
    %1211 = vmatpush2.msra.mxu0 0.0
    %1212 = vmatprep.subr.mxu0 0.0
    %1213 = vmatpush2.msra.mxu0 0.0
    %1214 = vmatprep.subr.mxu0 0.0
    %1215 = vmatpush2.msra.mxu0 0.0
    %1216 = vmatprep.subr.mxu0 0.0
    %1217 = vmatpush2.msra.mxu0 0.0
    %1218 = vmatprep.subr.mxu0 0.0
    %1219 = vmatpush2.msra.mxu0 0.0
    %1220 = vmatprep.subr.mxu0 0.0
    %1221 = vmatpush2.msra.mxu0 0.0
    %1222 = vmatprep.subr.mxu0 0.0
    %1223 = vmatpush2.msra.mxu0 0.0
    %1224 = vmatprep.subr.mxu0 0.0
    %1225 = vmatpush2.msra.mxu0 0.0
    %1226 = vmatprep.subr.mxu0 0.0
    %1227 = vmatpush2.msra.mxu0 0.0
    %1228 = vmatprep.subr.mxu0 0.0
    %1229 = vmatpush2.msra.mxu0 0.0
    %1230 = vmatprep.subr.mxu0 0.0
    %1231 = vmatpush2.msra.mxu0 0.0
    %1232 = vmatprep.subr.mxu0 0.0
    %1233 = vmatpush2.msra.mxu0 0.0
    %1234 = vmatprep.subr.mxu0 0.0
    %1235 = vmatpush2.msra.mxu0 0.0
    %1236 = vmatprep.subr.mxu0 0.0
    %1237 = vmatpush2.msra.mxu0 0.0
    %1238 = vmatprep.mubr.f32.mxu0 0.0
    %1239 = vmatmul.mubr.f32.gmra.mxu0 %v1172
    %v1240 = vpop.f32.mrf.mxu0
    %v1241 = vadd.f32 0.0, %v1240
    %v1242 = vpop.f32.mrf.mxu0
    %1243 = vdwg.mxu0
    %v1244 = vadd.f32 %v1162, %v1241
    %v1245 = vld [vmem:[#allocation7 + $0x70] sm:$0xf]
    %v1246 = vld [vmem:[#allocation7 + $0x74] sm:$0xf]
    %v1247 = vld [vmem:[#allocation7 + $0x78] sm:$0xf]
    %v1248 = vld [vmem:[#allocation7 + $0x7c] sm:$0xf]
    %v1249 = vunpack.c.l.bf16 %v1245
    %v1250 = vunpack.c.l.bf16 %v1246
    %v1251 = vunpack.c.l.bf16 %v1247
    %v1252 = vunpack.c.l.bf16 %v1248
    %v1253 = vrot.slane %v997, 3
    %v1254 = vsel %vm461, %v1253, 0
    %1256 = vmatprep.subr.mxu0 0.0
    %1257 = vmatpush1.msra.mxu0 0.0
    %1258 = vmatprep.subr.mxu0 0.0
    %1259 = vmatpush1.msra.mxu0 0.0
    %1260 = vmatprep.subr.mxu0 0.0
    %1261 = vmatpush1.msra.mxu0 0.0
    %1262 = vmatprep.subr.mxu0 0.0
    %1263 = vmatpush1.msra.mxu0 0.0
    %1264 = vmatprep.subr.mxu0 0.0
    %1265 = vmatpush1.msra.mxu0 0.0
    %1266 = vmatprep.subr.mxu0 0.0
    %1267 = vmatpush1.msra.mxu0 0.0
    %1268 = vmatprep.subr.mxu0 0.0
    %1269 = vmatpush1.msra.mxu0 0.0
    %1270 = vmatprep.subr.mxu0 0.0
    %1271 = vmatpush1.msra.mxu0 0.0
    %1272 = vmatprep.subr.mxu0 0.0
    %1273 = vmatpush1.msra.mxu0 0.0
    %1274 = vmatprep.subr.mxu0 0.0
    %1275 = vmatpush1.msra.mxu0 0.0
    %1276 = vmatprep.subr.mxu0 0.0
    %1277 = vmatpush1.msra.mxu0 0.0
    %1278 = vmatprep.subr.mxu0 0.0
    %1279 = vmatpush1.msra.mxu0 0.0
    %1280 = vmatprep.subr.mxu0 0.0
    %1281 = vmatpush1.msra.mxu0 %v1252
    %1282 = vmatprep.subr.mxu0 0.0
    %1283 = vmatpush1.msra.mxu0 %v1251
    %1284 = vmatprep.subr.mxu0 0.0
    %1285 = vmatpush1.msra.mxu0 %v1250
    %1286 = vmatprep.subr.mxu0 0.0
    %1287 = vmatpush1.msra.mxu0 %v1249
    %1288 = vmatprep.subr.mxu0 0.0
    %1289 = vmatpush2.msra.mxu0 0.0
    %1290 = vmatprep.subr.mxu0 0.0
    %1291 = vmatpush2.msra.mxu0 0.0
    %1292 = vmatprep.subr.mxu0 0.0
    %1293 = vmatpush2.msra.mxu0 0.0
    %1294 = vmatprep.subr.mxu0 0.0
    %1295 = vmatpush2.msra.mxu0 0.0
    %1296 = vmatprep.subr.mxu0 0.0
    %1297 = vmatpush2.msra.mxu0 0.0
    %1298 = vmatprep.subr.mxu0 0.0
    %1299 = vmatpush2.msra.mxu0 0.0
    %1300 = vmatprep.subr.mxu0 0.0
    %1301 = vmatpush2.msra.mxu0 0.0
    %1302 = vmatprep.subr.mxu0 0.0
    %1303 = vmatpush2.msra.mxu0 0.0
    %1304 = vmatprep.subr.mxu0 0.0
    %1305 = vmatpush2.msra.mxu0 0.0
    %1306 = vmatprep.subr.mxu0 0.0
    %1307 = vmatpush2.msra.mxu0 0.0
    %1308 = vmatprep.subr.mxu0 0.0
    %1309 = vmatpush2.msra.mxu0 0.0
    %1310 = vmatprep.subr.mxu0 0.0
    %1311 = vmatpush2.msra.mxu0 0.0
    %1312 = vmatprep.subr.mxu0 0.0
    %1313 = vmatpush2.msra.mxu0 0.0
    %1314 = vmatprep.subr.mxu0 0.0
    %1315 = vmatpush2.msra.mxu0 0.0
    %1316 = vmatprep.subr.mxu0 0.0
    %1317 = vmatpush2.msra.mxu0 0.0
    %1318 = vmatprep.subr.mxu0 0.0
    %1319 = vmatpush2.msra.mxu0 0.0
    %1320 = vmatprep.mubr.f32.mxu0 0.0
    %1321 = vmatmul.mubr.f32.gmra.mxu0 %v1254
    %v1322 = vpop.f32.mrf.mxu0
    %v1323 = vadd.f32 0.0, %v1322
    %v1324 = vpop.f32.mrf.mxu0
    %1325 = vdwg.mxu0
    %v1326 = vadd.f32 %v1244, %v1323
    %v1327 = vmax.f32 %v1326, 0.0
    %v1328 = vld [vmem:[#allocation7 + $0x80] sm:$0xf]
    %v1329 = vld [vmem:[#allocation7 + $0x84] sm:$0xf]
    %v1330 = vld [vmem:[#allocation7 + $0x88] sm:$0xf]
    %v1331 = vld [vmem:[#allocation7 + $0x8c] sm:$0xf]
    %v1332 = vld [vmem:[#allocation7 + $0x90] sm:$0xf]
    %v1333 = vld [vmem:[#allocation7 + $0x94] sm:$0xf]
    %v1334 = vld [vmem:[#allocation7 + $0x98] sm:$0xf]
    %v1335 = vld [vmem:[#allocation7 + $0x9c] sm:$0xf]
    %v1336 = vunpack.c.l.bf16 %v1328
    %v1337 = vunpack.c.l.bf16 %v1329
    %v1338 = vunpack.c.l.bf16 %v1330
    %v1339 = vunpack.c.l.bf16 %v1331
    %v1340 = vunpack.c.l.bf16 %v1332
    %v1341 = vunpack.c.l.bf16 %v1333
    %v1342 = vunpack.c.l.bf16 %v1334
    %v1343 = vunpack.c.l.bf16 %v1335
    %v1344 = vld [vmem:[#allocation8 + $0x63] sm:$0x1]
    %vm1345 = vcmask 523264
    %v1347 = vsel %vm1345, %v1327, 0
    %1349 = vmatprep.subr.mxu0 0.0
    %1350 = vmatpush1.msra.mxu0 0.0
    %1351 = vmatprep.subr.mxu0 0.0
    %1352 = vmatpush1.msra.mxu0 0.0
    %1353 = vmatprep.subr.mxu0 0.0
    %1354 = vmatpush1.msra.mxu0 0.0
    %1355 = vmatprep.subr.mxu0 0.0
    %1356 = vmatpush1.msra.mxu0 0.0
    %1357 = vmatprep.subr.mxu0 0.0
    %1358 = vmatpush1.msra.mxu0 0.0
    %1359 = vmatprep.subr.mxu0 0.0
    %1360 = vmatpush1.msra.mxu0 0.0
    %1361 = vmatprep.subr.mxu0 0.0
    %1362 = vmatpush1.msra.mxu0 0.0
    %1363 = vmatprep.subr.mxu0 0.0
    %1364 = vmatpush1.msra.mxu0 0.0
    %1365 = vmatprep.subr.mxu0 0.0
    %1366 = vmatpush1.msra.mxu0 %v1343
    %1367 = vmatprep.subr.mxu0 0.0
    %1368 = vmatpush1.msra.mxu0 %v1342
    %1369 = vmatprep.subr.mxu0 0.0
    %1370 = vmatpush1.msra.mxu0 %v1341
    %1371 = vmatprep.subr.mxu0 0.0
    %1372 = vmatpush1.msra.mxu0 %v1340
    %1373 = vmatprep.subr.mxu0 0.0
    %1374 = vmatpush1.msra.mxu0 %v1339
    %1375 = vmatprep.subr.mxu0 0.0
    %1376 = vmatpush1.msra.mxu0 %v1338
    %1377 = vmatprep.subr.mxu0 0.0
    %1378 = vmatpush1.msra.mxu0 %v1337
    %1379 = vmatprep.subr.mxu0 0.0
    %1380 = vmatpush1.msra.mxu0 %v1336
    %1381 = vmatprep.subr.mxu0 0.0
    %1382 = vmatpush2.msra.mxu0 0.0
    %1383 = vmatprep.subr.mxu0 0.0
    %1384 = vmatpush2.msra.mxu0 0.0
    %1385 = vmatprep.subr.mxu0 0.0
    %1386 = vmatpush2.msra.mxu0 0.0
    %1387 = vmatprep.subr.mxu0 0.0
    %1388 = vmatpush2.msra.mxu0 0.0
    %1389 = vmatprep.subr.mxu0 0.0
    %1390 = vmatpush2.msra.mxu0 0.0
    %1391 = vmatprep.subr.mxu0 0.0
    %1392 = vmatpush2.msra.mxu0 0.0
    %1393 = vmatprep.subr.mxu0 0.0
    %1394 = vmatpush2.msra.mxu0 0.0
    %1395 = vmatprep.subr.mxu0 0.0
    %1396 = vmatpush2.msra.mxu0 0.0
    %1397 = vmatprep.subr.mxu0 0.0
    %1398 = vmatpush2.msra.mxu0 0.0
    %1399 = vmatprep.subr.mxu0 0.0
    %1400 = vmatpush2.msra.mxu0 0.0
    %1401 = vmatprep.subr.mxu0 0.0
    %1402 = vmatpush2.msra.mxu0 0.0
    %1403 = vmatprep.subr.mxu0 0.0
    %1404 = vmatpush2.msra.mxu0 0.0
    %1405 = vmatprep.subr.mxu0 0.0
    %1406 = vmatpush2.msra.mxu0 0.0
    %1407 = vmatprep.subr.mxu0 0.0
    %1408 = vmatpush2.msra.mxu0 0.0
    %1409 = vmatprep.subr.mxu0 0.0
    %1410 = vmatpush2.msra.mxu0 0.0
    %1411 = vmatprep.subr.mxu0 0.0
    %1412 = vmatpush2.msra.mxu0 0.0
    %1413 = vmatprep.mubr.f32.mxu0 0.0
    %1414 = vmatmul.mubr.f32.gmra.mxu0 %v1347
    %v1415 = vpop.f32.mrf.mxu0
    %v1416 = vadd.f32 %v1344, %v1415
    %v1417 = vpop.f32.mrf.mxu0
    %1418 = vdwg.mxu0
    %v1420 = vrot.slane %v319, 7
    %v1422 = vsel %vm443, %v1416, %v1420
    %1423 = vst [vmem:[#allocation10] sm:$0xf] %v1422
    // Predicated region
    $region34: #{tpu_custom_call.1} parent=1 // pred_check
      _
    $region35: #{tpu_custom_call.1} parent=1 // pred_check_branch
      %1425 = sbr.rel (0) target = $region37
    $region36: #{tpu_custom_call.1} parent=1 // pred_region
      %s1427 = ssub.s32 64, 64
      %1428 = vsyncadd [#allocation4], %s1427
      %s1430 = sshll.u32 [#allocation10], 4
      %s1431 = int_to_ptr.vmem [resolvable:$true] %s1430
      %1433 = dma.vmem_to_hbm [thread:$0]  %s1431, 64, %s4, [#allocation4]
    $region37: #{tpu_custom_call.1} parent=1 // pred_fallthru
      _
    // Predicated region
    $region38: #{tpu_custom_call.1} parent=1 // pred_check
      _
    $region39: #{tpu_custom_call.1} parent=1 // pred_check_branch
      %1435 = sbr.rel (0) target = $region41
    $region40: #{tpu_custom_call.1} parent=1 // pred_region
      %1436 = dma.done [#allocation4], 64
    $region41: #{tpu_custom_call.1} parent=1 // pred_fallthru
      _
    %1437 = vsyncpa [#allocation3], 1
    %1438 = vsyncpa [#allocation6], 1
    %1439 = vsyncpa [#allocation9], 1
    %1440 = vsyncpa [#allocation4], 1

</llo_original>
